<compile_context>
chip_gen: v7x
topology: tpu7x:2x2x1
jax: 0.10.0
libtpu: 0.0.40
codegen_flags: <defaults>
</compile_context>

<pallas_src>
from functools import partial

import jax
import jax.numpy as jnp
from jax.experimental import pallas as pl
from jax.experimental.pallas import tpu as pltpu


# --------------------------------------------------------------------------------------
# Pallas kernel: fused  cat -> conv1  |  conv2 + conv3 -> sigmoid  |  multiply
# --------------------------------------------------------------------------------------
def _dfi_kernel(x1_ref, x2_ref, w1a_ref, w1b_ref, w2_ref, w3_ref, bsum_ref, o_ref):
    # x1_ref / x2_ref : (1, C, M)  one batch element, channels x flattened voxels
    # w1a_ref/w1b_ref : (C, C)     conv1 weight split over the concat (no bias)
    # w2_ref / w3_ref : (1, C)     conv2 / conv3 weights
    # bsum_ref        : (1,) SMEM  conv2.bias + conv3.bias (scalar)
    # o_ref           : (1, C, M)
    x1 = x1_ref[0]                                                    # (C, M)
    x2 = x2_ref[0]                                                    # (C, M)

    # conv1(cat([x1, x2])) == W1a @ x1 + W1b @ x2   (split-K, concat never built)
    out = (jnp.dot(w1a_ref[...], x1, preferred_element_type=jnp.float32)
           + jnp.dot(w1b_ref[...], x2, preferred_element_type=jnp.float32))  # (C, M)

    # att = conv2(x1) + conv3(x2)  -> a single (1, M) row
    att = (jnp.dot(w2_ref[...], x1, preferred_element_type=jnp.float32)
           + jnp.dot(w3_ref[...], x2, preferred_element_type=jnp.float32)
           + bsum_ref[0])                                             # (1, M)

    sig = 1.0 / (1.0 + jnp.exp(-att))                                 # sigmoid (EUP exp)
    o_ref[0] = (out * sig).astype(o_ref.dtype)                        # broadcast over C


# --------------------------------------------------------------------------------------
# wrapper
# --------------------------------------------------------------------------------------
@jax.jit
def dfi_forward(params, x1, x2):
    """x1, x2: (N, C, D, H, W) float32 (PyTorch NCDHW). Returns (N, C, D, H, W)."""
    N, C, D, H, W = x1.shape
    M = D * H * W
    x1r = x1.reshape(N, C, M)            # free reshape (contiguous), no transpose
    x2r = x2.reshape(N, C, M)
    bsum = jnp.reshape(params["b2"] + params["b3"], (1,)).astype(jnp.float32)

    out = pl.pallas_call(
        _dfi_kernel,
        out_shape=jax.ShapeDtypeStruct((N, C, M), jnp.float32),
        grid=(N,),
        in_specs=[
            pl.BlockSpec((1, C, M), lambda n: (n, 0, 0)),
            pl.BlockSpec((1, C, M), lambda n: (n, 0, 0)),
            pl.BlockSpec((C, C), lambda n: (0, 0)),
            pl.BlockSpec((C, C), lambda n: (0, 0)),
            pl.BlockSpec((1, C), lambda n: (0, 0)),
            pl.BlockSpec((1, C), lambda n: (0, 0)),
            pl.BlockSpec(memory_space=pltpu.MemorySpace.SMEM),   # scalar bias sum
        ],
        out_specs=pl.BlockSpec((1, C, M), lambda n: (n, 0, 0)),
        compiler_params=pltpu.CompilerParams(
            dimension_semantics=("parallel",)),                  # v7x: shard N over 2 TCs
    )(x1r, x2r, params["w1a"], params["w1b"], params["w2"], params["w3"], bsum)

    return out.reshape(N, C, D, H, W)


# --------------------------------------------------------------------------------------
# parameters (deterministic synthetic init, matching the torch module's shapes)
# --------------------------------------------------------------------------------------
def init_dfi_params(key, dim):
    k1, k2, k3, k4, k5, k6 = jax.random.split(key, 6)
    s1 = (2.0 * dim) ** -0.5
    s2 = float(dim) ** -0.5
    return dict(
        # conv1: Conv3d(2*dim, dim, 1, bias=False); weight split over the concat axis
        w1a=jax.random.normal(k1, (dim, dim), jnp.float32) * s1,   # applied to x1
        w1b=jax.random.normal(k2, (dim, dim), jnp.float32) * s1,   # applied to x2
        # conv2 / conv3: Conv3d(dim, 1, 1, bias=True)
        w2=jax.random.normal(k3, (1, dim), jnp.float32) * s2,
        w3=jax.random.normal(k4, (1, dim), jnp.float32) * s2,
        b2=0.01 * jax.random.normal(k5, (), jnp.float32),
        b3=0.01 * jax.random.normal(k6, (), jnp.float32),
    )


# pure-JAX reference (mirrors the torch forward) for an in-script correctness check
def dfi_reference(params, x1, x2):
    N, C, D, H, W = x1.shape
    a = x1.reshape(N, C, -1)
    b = x2.reshape(N, C, -1)
    out = (jnp.einsum("oc,ncm->nom", params["w1a"], a)
           + jnp.einsum("oc,ncm->nom", params["w1b"], b))
    att = (jnp.einsum("oc,ncm->nom", params["w2"], a)
           + jnp.einsum("oc,ncm->nom", params["w3"], b)
           + params["b2"] + params["b3"])
    return (out * jax.nn.sigmoid(att)).reshape(N, C, D, H, W)


if __name__ == "__main__":
    key = jax.random.PRNGKey(0)
    kp, kx1, kx2 = jax.random.split(key, 3)

    dim = 16
    N, D, H, W = 2, 8, 16, 16
    params = init_dfi_params(kp, dim)
    x1 = jax.random.normal(kx1, (N, dim, D, H, W), jnp.float32)
    x2 = jax.random.normal(kx2, (N, dim, D, H, W), jnp.float32)

    y = dfi_forward(params, x1, x2)
    jax.block_until_ready(y)

    assert y.shape == (N, dim, D, H, W), y.shape
    assert bool(jnp.all(jnp.isfinite(y)))
    y_ref = dfi_reference(params, x1, x2)
    err = float(jnp.max(jnp.abs(y - y_ref)))
    assert jnp.allclose(y, y_ref, atol=1e-3, rtol=1e-3), err

    print("KERNEL_OK")
</pallas_src>

<mosaic_0001>
module attributes {stable_mosaic.version = 11 : i64} {
  func.func @_dfi_kernel(%arg0: i32, %arg1: memref<1x16x2048xf32, #tpu.memory_space<vmem>>, %arg2: memref<1x16x2048xf32, #tpu.memory_space<vmem>>, %arg3: memref<16x16xf32, #tpu.memory_space<vmem>>, %arg4: memref<16x16xf32, #tpu.memory_space<vmem>>, %arg5: memref<1x16xf32, #tpu.memory_space<vmem>>, %arg6: memref<1x16xf32, #tpu.memory_space<vmem>>, %arg7: memref<1xf32, #tpu.memory_space<smem>>, %arg8: memref<1x16x2048xf32, #tpu.memory_space<vmem>>) attributes {dimension_semantics = [#tpu.dimension_semantics<parallel>], iteration_bounds = array<i64: 2>, scalar_prefetch = 0 : i64, scratch_operands = 0 : i64, tpu.core_type = #tpu.core_type<tc>, window_params = [{transform_indices = @transform_0, window_bounds = array<i64: 1, 16, 2048>}, {transform_indices = @transform_1, window_bounds = array<i64: 1, 16, 2048>}, {pipeline_mode = #tpu.pipeline_mode<synchronous>, transform_indices = @transform_2, window_bounds = array<i64: 16, 16>}, {pipeline_mode = #tpu.pipeline_mode<synchronous>, transform_indices = @transform_3, window_bounds = array<i64: 16, 16>}, {pipeline_mode = #tpu.pipeline_mode<synchronous>, transform_indices = @transform_4, window_bounds = array<i64: 1, 16>}, {pipeline_mode = #tpu.pipeline_mode<synchronous>, transform_indices = @transform_5, window_bounds = array<i64: 1, 16>}, {transform_indices = @transform_6, window_bounds = array<i64: 1>}, {transform_indices = @transform_7, window_bounds = array<i64: 1, 16, 2048>}]} {
    %c0 = arith.constant 0 : index
    %c0_0 = arith.constant 0 : index
    %c0_1 = arith.constant 0 : index
    %0 = vector.load %arg1[%c0, %c0_0, %c0_1] : memref<1x16x2048xf32, #tpu.memory_space<vmem>>, vector<1x16x2048xf32>
    %1 = vector.shape_cast %0 : vector<1x16x2048xf32> to vector<16x2048xf32>
    %c0_2 = arith.constant 0 : index
    %c0_3 = arith.constant 0 : index
    %c0_4 = arith.constant 0 : index
    %2 = vector.load %arg2[%c0_2, %c0_3, %c0_4] : memref<1x16x2048xf32, #tpu.memory_space<vmem>>, vector<1x16x2048xf32>
    %3 = vector.shape_cast %2 : vector<1x16x2048xf32> to vector<16x2048xf32>
    %c0_5 = arith.constant 0 : index
    %c0_6 = arith.constant 0 : index
    %4 = vector.load %arg3[%c0_5, %c0_6] : memref<16x16xf32, #tpu.memory_space<vmem>>, vector<16x16xf32>
    %cst = arith.constant dense<0.000000e+00> : vector<16x2048xf32>
    %5 = tpu.matmul %4, %1, %cst {dimension_numbers = #tpu.dot_dimension_numbers<[1], [0], [0], [1], [0, 0, 1, 1], [], []>} : vector<16x16xf32>, vector<16x2048xf32>, vector<16x2048xf32> -> vector<16x2048xf32>
    %c0_7 = arith.constant 0 : index
    %c0_8 = arith.constant 0 : index
    %6 = vector.load %arg4[%c0_7, %c0_8] : memref<16x16xf32, #tpu.memory_space<vmem>>, vector<16x16xf32>
    %cst_9 = arith.constant dense<0.000000e+00> : vector<16x2048xf32>
    %7 = tpu.matmul %6, %3, %cst_9 {dimension_numbers = #tpu.dot_dimension_numbers<[1], [0], [0], [1], [0, 0, 1, 1], [], []>} : vector<16x16xf32>, vector<16x2048xf32>, vector<16x2048xf32> -> vector<16x2048xf32>
    %8 = arith.addf %5, %7 : vector<16x2048xf32>
    %c0_10 = arith.constant 0 : index
    %c0_11 = arith.constant 0 : index
    %9 = vector.load %arg5[%c0_10, %c0_11] : memref<1x16xf32, #tpu.memory_space<vmem>>, vector<1x16xf32>
    %cst_12 = arith.constant dense<0.000000e+00> : vector<1x2048xf32>
    %10 = tpu.matmul %9, %1, %cst_12 {dimension_numbers = #tpu.dot_dimension_numbers<[1], [0], [0], [1], [0, 0, 1, 1], [], []>} : vector<1x16xf32>, vector<16x2048xf32>, vector<1x2048xf32> -> vector<1x2048xf32>
    %c0_13 = arith.constant 0 : index
    %c0_14 = arith.constant 0 : index
    %11 = vector.load %arg6[%c0_13, %c0_14] : memref<1x16xf32, #tpu.memory_space<vmem>>, vector<1x16xf32>
    %cst_15 = arith.constant dense<0.000000e+00> : vector<1x2048xf32>
    %12 = tpu.matmul %11, %3, %cst_15 {dimension_numbers = #tpu.dot_dimension_numbers<[1], [0], [0], [1], [0, 0, 1, 1], [], []>} : vector<1x16xf32>, vector<16x2048xf32>, vector<1x2048xf32> -> vector<1x2048xf32>
    %13 = arith.addf %10, %12 : vector<1x2048xf32>
    %c0_16 = arith.constant 0 : index
    %14 = memref.load %arg7[%c0_16] : memref<1xf32, #tpu.memory_space<smem>>
    %15 = vector.broadcast %14 : f32 to vector<1x2048xf32>
    %16 = arith.addf %13, %15 : vector<1x2048xf32>
    %cst_17 = arith.constant 0.000000e+00 : f32
    %17 = vector.broadcast %cst_17 : f32 to vector<1x2048xf32>
    %18 = arith.subf %17, %16 : vector<1x2048xf32>
    %19 = math.exp %18 : vector<1x2048xf32>
    %cst_18 = arith.constant 1.000000e+00 : f32
    %20 = vector.broadcast %cst_18 : f32 to vector<1x2048xf32>
    %21 = arith.addf %20, %19 : vector<1x2048xf32>
    %cst_19 = arith.constant 1.000000e+00 : f32
    %22 = vector.broadcast %cst_19 : f32 to vector<1x2048xf32>
    %23 = arith.divf %22, %21 : vector<1x2048xf32>
    %24 = vector.broadcast %23 : vector<1x2048xf32> to vector<16x2048xf32>
    %25 = arith.mulf %8, %24 : vector<16x2048xf32>
    %c0_20 = arith.constant 0 : index
    %c0_21 = arith.constant 0 : index
    %c0_22 = arith.constant 0 : index
    %26 = vector.load %arg8[%c0_20, %c0_21, %c0_22] : memref<1x16x2048xf32, #tpu.memory_space<vmem>>, vector<1x16x2048xf32>
    %27 = vector.shape_cast %26 : vector<1x16x2048xf32> to vector<16x2048xf32>
    %28 = vector.shape_cast %25 : vector<16x2048xf32> to vector<1x16x2048xf32>
    tpu.vector_store %arg8[%c0_20, %c0_21, %c0_22], %28 {strides = array<i32>} : memref<1x16x2048xf32, #tpu.memory_space<vmem>>, vector<1x16x2048xf32>,
    return
  }
  func.func @transform_0(%arg0: i32) -> (i32, i32, i32) {
    %c0_i32 = arith.constant 0 : i32
    %c0_i32_0 = arith.constant 0 : i32
    %c0_i32_1 = arith.constant 0 : i32
    return %arg0, %c0_i32, %c0_i32_0 : i32, i32, i32
  }
  func.func @transform_1(%arg0: i32) -> (i32, i32, i32) {
    %c0_i32 = arith.constant 0 : i32
    %c0_i32_0 = arith.constant 0 : i32
    %c0_i32_1 = arith.constant 0 : i32
    return %arg0, %c0_i32, %c0_i32_0 : i32, i32, i32
  }
  func.func @transform_2(%arg0: i32) -> (i32, i32) {
    %c0_i32 = arith.constant 0 : i32
    %c0_i32_0 = arith.constant 0 : i32
    %c0_i32_1 = arith.constant 0 : i32
    return %c0_i32, %c0_i32_0 : i32, i32
  }
  func.func @transform_3(%arg0: i32) -> (i32, i32) {
    %c0_i32 = arith.constant 0 : i32
    %c0_i32_0 = arith.constant 0 : i32
    %c0_i32_1 = arith.constant 0 : i32
    return %c0_i32, %c0_i32_0 : i32, i32
  }
  func.func @transform_4(%arg0: i32) -> (i32, i32) {
    %c0_i32 = arith.constant 0 : i32
    %c0_i32_0 = arith.constant 0 : i32
    %c0_i32_1 = arith.constant 0 : i32
    return %c0_i32, %c0_i32_0 : i32, i32
  }
  func.func @transform_5(%arg0: i32) -> (i32, i32) {
    %c0_i32 = arith.constant 0 : i32
    %c0_i32_0 = arith.constant 0 : i32
    %c0_i32_1 = arith.constant 0 : i32
    return %c0_i32, %c0_i32_0 : i32, i32
  }
  func.func @transform_6(%arg0: i32) -> i32 {
    %c0_i32 = arith.constant 0 : i32
    %c0_i32_0 = arith.constant 0 : i32
    return %c0_i32 : i32
  }
  func.func @transform_7(%arg0: i32) -> (i32, i32, i32) {
    %c0_i32 = arith.constant 0 : i32
    %c0_i32_0 = arith.constant 0 : i32
    %c0_i32_1 = arith.constant 0 : i32
    return %arg0, %c0_i32, %c0_i32_0 : i32, i32, i32
  }
}

</mosaic_0001>

<llo_original>
// kernel: dfi_forward.1
$region0: #{dfi_forward.1}
  #allocation0 [shape = 'u32[]', space=smem, size = 0x4, offset = 0x4, fixed_abs, tag = 'smem constant byte address 0x4 - core index']
  #allocation1 [shape = 'u32[144,128]{1,0:T(1,128)}', space=vmem, size = 0x12000, scoped, tag = 'internal scratch']
  #allocation2 [shape = 'f32[1]{0:T(128)S(6)}', space=smem, size = 0x200, scoped, tag = 'scoped memory for dfi_forward.1']
  %s0 = inlined_call_operand.vmem [shape: f32[2,16,2048], index: 0, kind: input, shape index: {}]
  %s1 = inlined_call_operand.vmem [shape: f32[2,16,2048], index: 1, kind: input, shape index: {}]
  %s2 = inlined_call_operand.vmem [shape: f32[16,16], index: 2, kind: input, shape index: {}]
  %s3 = inlined_call_operand.vmem [shape: f32[16,16], index: 3, kind: input, shape index: {}]
  %s4 = inlined_call_operand.vmem [shape: f32[1,16], index: 4, kind: input, shape index: {}]
  %s5 = inlined_call_operand.vmem [shape: f32[1,16], index: 5, kind: input, shape index: {}]
  %s6 = inlined_call_operand.<no memory space> [shape: f32[1], index: 6, kind: input, shape index: {}]
  %s7 = inlined_call_operand.vmem [shape: f32[2,16,2048], index: 7, kind: output, shape index: {}]
  %s8 = sld [smem:[#allocation0]]
  $region61: #{dfi_forward.1} parent=0
    _
  %s10 = ssub.s32 1, %s8
  %s11 = scalar_select 0, %s10, %s8
  %12 = sst [smem:[#allocation2]] %s6
  loop: start=0, step=1, limit=4
  $region2: #{dfi_forward.1} parent=0 // loop_pre_header
    _
  $region3: #{dfi_forward.1} parent=0 // loop_header
    %s14 = sphi 0, %s18
    %p15 = scmp.ge.s32.totalorder %s14, 4
    %s24 = sphi 0, %s26
    %s27 = sphi 0, %s24
    %s28 = sphi 0, %s27
    %s44 = sphi 0, %s28
    %s50 = sphi 0, %s52
    %s53 = sphi 0, %s50
    %s54 = sphi 0, %s53
    %s70 = sphi 0, %s54
    %s74 = sphi 0, %s74
    %s76 = sphi 0, %s74
    %s77 = sphi 0, %s76
    %s91 = sphi 0, %s77
    %s95 = sphi 0, %s95
    %s97 = sphi 0, %s95
    %s98 = sphi 0, %s97
    %s112 = sphi 0, %s98
    %s116 = sphi 0, %s116
    %s118 = sphi 0, %s116
    %s119 = sphi 0, %s118
    %s133 = sphi 0, %s119
    %s137 = sphi 0, %s137
    %s139 = sphi 0, %s137
    %s140 = sphi 0, %s139
    %s154 = sphi 0, %s140
    %s158 = sphi 0, %s158
    %s160 = sphi 0, %s158
    %s161 = sphi 0, %s160
    %s175 = sphi 0, %s161
    %s181 = sphi 0, %s183
    %s184 = sphi 0, %s181
    %s185 = sphi 0, %s184
    %s201 = sphi 0, %s185
  $region4: #{dfi_forward.1} parent=0 // loop_header_branch
    %17 = sbr.rel (%p15) target = $region8
  $region5: #{dfi_forward.1} parent=0 // loop_body
    %s19 = ssub.s32 %s14, 1
    %s20 = ssub.s32 %s14, 2
    %s21 = sadd.s32 %s14, 1
    %s22 = ssub.s32 %s14, %s21
    %p23 = scmp.eq.s32.totalorder %s22, 0
    %s25 = sadd.s32 %s24, 1
    %s26 = scalar_select %p23, %s24, %s25
    %p29 = pneg %p23
    %p30 = scmp.eq.s32.totalorder %s14, 1
    %p31 = por %p29, %p30
    %p32 = scmp.ne.s32.totalorder %s24, %s27
    %p33 = scmp.eq.s32.totalorder %s14, 0
    %p34 = por %p32, %p33
    %p35 = scmp.ne.s32.totalorder %s24, %s27
    %p36 = scmp.eq.s32.totalorder %s19, 1
    %p37 = por %p35, %p36
    %p38 = scmp.ne.s32.totalorder %s27, %s28
    %p39 = scmp.eq.s32.totalorder %s19, 0
    %p40 = por %p38, %p39
    %p41 = scmp.ne.s32.totalorder %s27, %s28
    %p42 = scmp.eq.s32.totalorder %s20, 1
    %p43 = por %p41, %p42
    %p45 = scmp.ne.s32.totalorder %s28, %s44
    %p46 = scmp.eq.s32.totalorder %s20, 0
    %p47 = por %p45, %p46
    %s48 = ssub.s32 %s14, %s21
    %p49 = scmp.eq.s32.totalorder %s48, 0
    %s51 = sadd.s32 %s50, 1
    %s52 = scalar_select %p49, %s50, %s51
    %p55 = pneg %p49
    %p56 = scmp.eq.s32.totalorder %s14, 1
    %p57 = por %p55, %p56
    %p58 = scmp.ne.s32.totalorder %s50, %s53
    %p59 = scmp.eq.s32.totalorder %s14, 0
    %p60 = por %p58, %p59
    %p61 = scmp.ne.s32.totalorder %s50, %s53
    %p62 = scmp.eq.s32.totalorder %s19, 1
    %p63 = por %p61, %p62
    %p64 = scmp.ne.s32.totalorder %s53, %s54
    %p65 = scmp.eq.s32.totalorder %s19, 0
    %p66 = por %p64, %p65
    %p67 = scmp.ne.s32.totalorder %s53, %s54
    %p68 = scmp.eq.s32.totalorder %s20, 1
    %p69 = por %p67, %p68
    %p71 = scmp.ne.s32.totalorder %s54, %s70
    %p72 = scmp.eq.s32.totalorder %s20, 0
    %p73 = por %p71, %p72
    %s75 = sadd.s32 %s74, 1
    %p78 = scmp.eq.s32.totalorder %s14, 1
    %p79 = scmp.ne.s32.totalorder %s74, %s76
    %p80 = scmp.eq.s32.totalorder %s14, 0
    %p81 = por %p79, %p80
    %p82 = scmp.ne.s32.totalorder %s74, %s76
    %p83 = scmp.eq.s32.totalorder %s19, 1
    %p84 = por %p82, %p83
    %p85 = scmp.ne.s32.totalorder %s76, %s77
    %p86 = scmp.eq.s32.totalorder %s19, 0
    %p87 = por %p85, %p86
    %p88 = scmp.ne.s32.totalorder %s76, %s77
    %p89 = scmp.eq.s32.totalorder %s20, 1
    %p90 = por %p88, %p89
    %p92 = scmp.ne.s32.totalorder %s77, %s91
    %p93 = scmp.eq.s32.totalorder %s20, 0
    %p94 = por %p92, %p93
    %s96 = sadd.s32 %s95, 1
    %p99 = scmp.eq.s32.totalorder %s14, 1
    %p100 = scmp.ne.s32.totalorder %s95, %s97
    %p101 = scmp.eq.s32.totalorder %s14, 0
    %p102 = por %p100, %p101
    %p103 = scmp.ne.s32.totalorder %s95, %s97
    %p104 = scmp.eq.s32.totalorder %s19, 1
    %p105 = por %p103, %p104
    %p106 = scmp.ne.s32.totalorder %s97, %s98
    %p107 = scmp.eq.s32.totalorder %s19, 0
    %p108 = por %p106, %p107
    %p109 = scmp.ne.s32.totalorder %s97, %s98
    %p110 = scmp.eq.s32.totalorder %s20, 1
    %p111 = por %p109, %p110
    %p113 = scmp.ne.s32.totalorder %s98, %s112
    %p114 = scmp.eq.s32.totalorder %s20, 0
    %p115 = por %p113, %p114
    %s117 = sadd.s32 %s116, 1
    %p120 = scmp.eq.s32.totalorder %s14, 1
    %p121 = scmp.ne.s32.totalorder %s116, %s118
    %p122 = scmp.eq.s32.totalorder %s14, 0
    %p123 = por %p121, %p122
    %p124 = scmp.ne.s32.totalorder %s116, %s118
    %p125 = scmp.eq.s32.totalorder %s19, 1
    %p126 = por %p124, %p125
    %p127 = scmp.ne.s32.totalorder %s118, %s119
    %p128 = scmp.eq.s32.totalorder %s19, 0
    %p129 = por %p127, %p128
    %p130 = scmp.ne.s32.totalorder %s118, %s119
    %p131 = scmp.eq.s32.totalorder %s20, 1
    %p132 = por %p130, %p131
    %p134 = scmp.ne.s32.totalorder %s119, %s133
    %p135 = scmp.eq.s32.totalorder %s20, 0
    %p136 = por %p134, %p135
    %s138 = sadd.s32 %s137, 1
    %p141 = scmp.eq.s32.totalorder %s14, 1
    %p142 = scmp.ne.s32.totalorder %s137, %s139
    %p143 = scmp.eq.s32.totalorder %s14, 0
    %p144 = por %p142, %p143
    %p145 = scmp.ne.s32.totalorder %s137, %s139
    %p146 = scmp.eq.s32.totalorder %s19, 1
    %p147 = por %p145, %p146
    %p148 = scmp.ne.s32.totalorder %s139, %s140
    %p149 = scmp.eq.s32.totalorder %s19, 0
    %p150 = por %p148, %p149
    %p151 = scmp.ne.s32.totalorder %s139, %s140
    %p152 = scmp.eq.s32.totalorder %s20, 1
    %p153 = por %p151, %p152
    %p155 = scmp.ne.s32.totalorder %s140, %s154
    %p156 = scmp.eq.s32.totalorder %s20, 0
    %p157 = por %p155, %p156
    %s159 = sadd.s32 %s158, 1
    %p162 = scmp.eq.s32.totalorder %s14, 1
    %p163 = scmp.ne.s32.totalorder %s158, %s160
    %p164 = scmp.eq.s32.totalorder %s14, 0
    %p165 = por %p163, %p164
    %p166 = scmp.ne.s32.totalorder %s158, %s160
    %p167 = scmp.eq.s32.totalorder %s19, 1
    %p168 = por %p166, %p167
    %p169 = scmp.ne.s32.totalorder %s160, %s161
    %p170 = scmp.eq.s32.totalorder %s19, 0
    %p171 = por %p169, %p170
    %p172 = scmp.ne.s32.totalorder %s160, %s161
    %p173 = scmp.eq.s32.totalorder %s20, 1
    %p174 = por %p172, %p173
    %p176 = scmp.ne.s32.totalorder %s161, %s175
    %p177 = scmp.eq.s32.totalorder %s20, 0
    %p178 = por %p176, %p177
    %s179 = ssub.s32 %s14, %s21
    %p180 = scmp.eq.s32.totalorder %s179, 0
    %s182 = sadd.s32 %s181, 1
    %s183 = scalar_select %p180, %s181, %s182
    %p186 = pneg %p180
    %p187 = scmp.eq.s32.totalorder %s14, 1
    %p188 = por %p186, %p187
    %p189 = scmp.ne.s32.totalorder %s181, %s184
    %p190 = scmp.eq.s32.totalorder %s14, 0
    %p191 = por %p189, %p190
    %p192 = scmp.ne.s32.totalorder %s181, %s184
    %p193 = scmp.eq.s32.totalorder %s19, 1
    %p194 = por %p192, %p193
    %p195 = scmp.ne.s32.totalorder %s184, %s185
    %p196 = scmp.eq.s32.totalorder %s19, 0
    %p197 = por %p195, %p196
    %p198 = scmp.ne.s32.totalorder %s184, %s185
    %p199 = scmp.eq.s32.totalorder %s20, 1
    %p200 = por %p198, %p199
    %p202 = scmp.ne.s32.totalorder %s185, %s201
    %p203 = scmp.eq.s32.totalorder %s20, 0
    %p204 = por %p202, %p203
    %p205 = scmp.le.s32.totalorder 1, %s14
    %p206 = scmp.lt.s32.totalorder %s14, 3
    %p207 = pnand %p205, %p206
    %p208 = pneg %p207
    // Predicated region
    $region9: #{dfi_forward.1} parent=5 // pred_check
      _
    $region10: #{dfi_forward.1} parent=5 // pred_check_branch
      %210 = sbr.rel (%p207) target = $region12
    $region11: #{dfi_forward.1} parent=5 // pred_region
      %s211 = ssub.s32 %s14, 1
      // Predicated region
      $region13: #{dfi_forward.1} parent=11 // pred_check
        %p212 = pneg %p87
      $region14: #{dfi_forward.1} parent=11 // pred_check_branch
        %214 = sbr.rel (%p212) target = $region16
      $region15: #{dfi_forward.1} parent=11 // pred_region
        _
      $region16: #{dfi_forward.1} parent=11 // pred_fallthru
        _
      // Predicated region
      $region17: #{dfi_forward.1} parent=11 // pred_check
        %p215 = pneg %p108
      $region18: #{dfi_forward.1} parent=11 // pred_check_branch
        %217 = sbr.rel (%p215) target = $region20
      $region19: #{dfi_forward.1} parent=11 // pred_region
        _
      $region20: #{dfi_forward.1} parent=11 // pred_fallthru
        _
      // Predicated region
      $region21: #{dfi_forward.1} parent=11 // pred_check
        %p218 = pneg %p129
      $region22: #{dfi_forward.1} parent=11 // pred_check_branch
        %220 = sbr.rel (%p218) target = $region24
      $region23: #{dfi_forward.1} parent=11 // pred_region
        _
      $region24: #{dfi_forward.1} parent=11 // pred_fallthru
        _
      // Predicated region
      $region25: #{dfi_forward.1} parent=11 // pred_check
        %p221 = pneg %p150
      $region26: #{dfi_forward.1} parent=11 // pred_check_branch
        %223 = sbr.rel (%p221) target = $region28
      $region27: #{dfi_forward.1} parent=11 // pred_region
        _
      $region28: #{dfi_forward.1} parent=11 // pred_fallthru
        _
      // Predicated region
      $region29: #{dfi_forward.1} parent=11 // pred_check
        %p224 = pneg %p171
      $region30: #{dfi_forward.1} parent=11 // pred_check_branch
        %226 = sbr.rel (%p224) target = $region32
      $region31: #{dfi_forward.1} parent=11 // pred_region
        _
      $region32: #{dfi_forward.1} parent=11 // pred_fallthru
        _
    $region12: #{dfi_forward.1} parent=5 // pred_fallthru
      _
    %p227 = scmp.lt.s32.totalorder %s14, 2
    // Predicated region
    $region33: #{dfi_forward.1} parent=5 // pred_check
      %p228 = pneg %p227
    $region34: #{dfi_forward.1} parent=5 // pred_check_branch
      %230 = sbr.rel (%p228) target = $region36
    $region35: #{dfi_forward.1} parent=5 // pred_region
      // Predicated region
      $region37: #{dfi_forward.1} parent=35 // pred_check
        %p231 = pneg %p34
      $region38: #{dfi_forward.1} parent=35 // pred_check_branch
        %233 = sbr.rel (%p231) target = $region40
      $region39: #{dfi_forward.1} parent=35 // pred_region
        %p234 = scmp.lt.s32.totalorder %s14, 1
        %s235 = scalar_select %p234, %s14, 1
        %s236 = smul.addr %s235, 32
        %s237 = smul.addr %s236, 8
        %s238 = scalar_lea.vmem %s0, %s237
      $region40: #{dfi_forward.1} parent=35 // pred_fallthru
        _
      // Predicated region
      $region41: #{dfi_forward.1} parent=35 // pred_check
        %p239 = pneg %p60
      $region42: #{dfi_forward.1} parent=35 // pred_check_branch
        %241 = sbr.rel (%p239) target = $region44
      $region43: #{dfi_forward.1} parent=35 // pred_region
        %p242 = scmp.lt.s32.totalorder %s14, 1
        %s243 = scalar_select %p242, %s14, 1
        %s244 = smul.addr %s243, 32
        %s245 = smul.addr %s244, 8
        %s246 = scalar_lea.vmem %s1, %s245
      $region44: #{dfi_forward.1} parent=35 // pred_fallthru
        _
    $region36: #{dfi_forward.1} parent=5 // pred_fallthru
      _
    %p247 = scmp.le.s32.totalorder 1, %s14
    %p248 = scmp.lt.s32.totalorder %s14, 3
    %p249 = pnand %p247, %p248
    %p250 = pneg %p249
    // Predicated region
    $region45: #{dfi_forward.1} parent=5 // pred_check
      _
    $region46: #{dfi_forward.1} parent=5 // pred_check_branch
      %252 = sbr.rel (%p249) target = $region48
    $region47: #{dfi_forward.1} parent=5 // pred_region
      %s253 = ssub.s32 %s14, 1
      %p254 = scmp.lt.s32.totalorder %s19, 1
      %s255 = scalar_select %p254, %s19, 1
      %s256 = smul.addr %s255, 32
      %s257 = smul.addr %s256, 8
      %s258 = scalar_lea.vmem %s0, %s257
      %p259 = pneg %p40
      %p260 = pneg %p37
      %p261 = scmp.lt.s32.totalorder %s19, 1
      %s262 = scalar_select %p261, %s19, 1
      %s263 = smul.addr %s262, 32
      %s264 = smul.addr %s263, 8
      %s265 = scalar_lea.vmem %s1, %s264
      %p266 = pneg %p66
      %p267 = pneg %p63
      %p268 = pneg %p87
      %p269 = pneg %p84
      %p270 = pneg %p108
      %p271 = pneg %p105
      %p272 = pneg %p129
      %p273 = pneg %p126
      %p274 = pneg %p150
      %p275 = pneg %p147
      %p276 = pneg %p171
      %p277 = pneg %p168
      %p278 = pneg %p197
      %p279 = pneg %p194
      %p280 = scmp.lt.s32.totalorder %s19, 1
      %s281 = scalar_select %p280, %s19, 1
      %s282 = smul.addr %s281, 32
      %s283 = smul.addr %s282, 8
      %s284 = scalar_lea.vmem %s7, %s283
      %p285 = scmp.lt.s32.totalorder %s19, 1
      %s286 = scalar_select %p285, %s19, 1
      %s287 = smul.addr %s286, 32
      %s288 = smul.addr %s287, 8
      %s289 = scalar_lea.vmem %s0, %s288
      %p290 = scmp.lt.s32.totalorder %s19, 1
      %s291 = scalar_select %p290, %s19, 1
      %s292 = smul.addr %s291, 32
      %s293 = smul.addr %s292, 8
      %s294 = scalar_lea.vmem %s1, %s293
      %p295 = scmp.lt.s32.totalorder %s19, 1
      %s296 = scalar_select %p295, %s19, 1
      %s297 = smul.addr %s296, 32
      %s298 = smul.addr %s297, 8
      %s299 = scalar_lea.vmem %s7, %s298
      %v300 = vld [vmem:[%s289] sm:$0xff]
      %v301 = vld [vmem:[%s289 + $0x8] sm:$0xff]
      %v302 = vld [vmem:[%s289 + $0x10] sm:$0xff]
      %v303 = vld [vmem:[%s289 + $0x18] sm:$0xff]
      %v304 = vld [vmem:[%s289 + $0x20] sm:$0xff]
      %v305 = vld [vmem:[%s289 + $0x28] sm:$0xff]
      %v306 = vld [vmem:[%s289 + $0x30] sm:$0xff]
      %v307 = vld [vmem:[%s289 + $0x38] sm:$0xff]
      %v308 = vld [vmem:[%s289 + $0x40] sm:$0xff]
      %v309 = vld [vmem:[%s289 + $0x48] sm:$0xff]
      %v310 = vld [vmem:[%s289 + $0x50] sm:$0xff]
      %v311 = vld [vmem:[%s289 + $0x58] sm:$0xff]
      %v312 = vld [vmem:[%s289 + $0x60] sm:$0xff]
      %v313 = vld [vmem:[%s289 + $0x68] sm:$0xff]
      %v314 = vld [vmem:[%s289 + $0x70] sm:$0xff]
      %v315 = vld [vmem:[%s289 + $0x78] sm:$0xff]
      %v316 = vld [vmem:[%s289 + $0x80] sm:$0xff]
      %v317 = vld [vmem:[%s289 + $0x88] sm:$0xff]
      %v318 = vld [vmem:[%s289 + $0x90] sm:$0xff]
      %v319 = vld [vmem:[%s289 + $0x98] sm:$0xff]
      %v320 = vld [vmem:[%s289 + $0xa0] sm:$0xff]
      %v321 = vld [vmem:[%s289 + $0xa8] sm:$0xff]
      %v322 = vld [vmem:[%s289 + $0xb0] sm:$0xff]
      %v323 = vld [vmem:[%s289 + $0xb8] sm:$0xff]
      %v324 = vld [vmem:[%s289 + $0xc0] sm:$0xff]
      %v325 = vld [vmem:[%s289 + $0xc8] sm:$0xff]
      %v326 = vld [vmem:[%s289 + $0xd0] sm:$0xff]
      %v327 = vld [vmem:[%s289 + $0xd8] sm:$0xff]
      %v328 = vld [vmem:[%s289 + $0xe0] sm:$0xff]
      %v329 = vld [vmem:[%s289 + $0xe8] sm:$0xff]
      %v330 = vld [vmem:[%s289 + $0xf0] sm:$0xff]
      %v331 = vld [vmem:[%s289 + $0xf8] sm:$0xff]
      %v332 = vld [vmem:[%s294] sm:$0xff]
      %v333 = vld [vmem:[%s294 + $0x8] sm:$0xff]
      %v334 = vld [vmem:[%s294 + $0x10] sm:$0xff]
      %v335 = vld [vmem:[%s294 + $0x18] sm:$0xff]
      %v336 = vld [vmem:[%s294 + $0x20] sm:$0xff]
      %v337 = vld [vmem:[%s294 + $0x28] sm:$0xff]
      %v338 = vld [vmem:[%s294 + $0x30] sm:$0xff]
      %v339 = vld [vmem:[%s294 + $0x38] sm:$0xff]
      %v340 = vld [vmem:[%s294 + $0x40] sm:$0xff]
      %v341 = vld [vmem:[%s294 + $0x48] sm:$0xff]
      %v342 = vld [vmem:[%s294 + $0x50] sm:$0xff]
      %v343 = vld [vmem:[%s294 + $0x58] sm:$0xff]
      %v344 = vld [vmem:[%s294 + $0x60] sm:$0xff]
      %v345 = vld [vmem:[%s294 + $0x68] sm:$0xff]
      %v346 = vld [vmem:[%s294 + $0x70] sm:$0xff]
      %v347 = vld [vmem:[%s294 + $0x78] sm:$0xff]
      %v348 = vld [vmem:[%s294 + $0x80] sm:$0xff]
      %v349 = vld [vmem:[%s294 + $0x88] sm:$0xff]
      %v350 = vld [vmem:[%s294 + $0x90] sm:$0xff]
      %v351 = vld [vmem:[%s294 + $0x98] sm:$0xff]
      %v352 = vld [vmem:[%s294 + $0xa0] sm:$0xff]
      %v353 = vld [vmem:[%s294 + $0xa8] sm:$0xff]
      %v354 = vld [vmem:[%s294 + $0xb0] sm:$0xff]
      %v355 = vld [vmem:[%s294 + $0xb8] sm:$0xff]
      %v356 = vld [vmem:[%s294 + $0xc0] sm:$0xff]
      %v357 = vld [vmem:[%s294 + $0xc8] sm:$0xff]
      %v358 = vld [vmem:[%s294 + $0xd0] sm:$0xff]
      %v359 = vld [vmem:[%s294 + $0xd8] sm:$0xff]
      %v360 = vld [vmem:[%s294 + $0xe0] sm:$0xff]
      %v361 = vld [vmem:[%s294 + $0xe8] sm:$0xff]
      %v362 = vld [vmem:[%s294 + $0xf0] sm:$0xff]
      %v363 = vld [vmem:[%s294 + $0xf8] sm:$0xff]
      %v364 = vld [vmem:[%s2] sm:$0xff]
      %v365 = vld [vmem:[%s2 + $0x8] sm:$0xff]
      %v366 = vld [vmem:[%s3] sm:$0xff]
      %v367 = vld [vmem:[%s3 + $0x8] sm:$0xff]
      %vm368 = vcmask 130048
      %v370 = vsel %vm368, %v366, 0
      %v373 = vsel %vm368, %v367, 0
      %375 = vmatprep.subr.mxu0 %v333
      %376 = vmatpush1.msra.mxu0 %v332
      %377 = vmatprep.subr.mxu0 %v349
      %378 = vmatpush1.msra.mxu0 %v348
      %379 = vmatprep.subr.mxu0 0.0
      %380 = vmatpush1.msra.mxu0 0.0
      %381 = vmatprep.subr.mxu0 0.0
      %382 = vmatpush1.msra.mxu0 0.0
      %383 = vmatprep.subr.mxu0 0.0
      %384 = vmatpush1.msra.mxu0 0.0
      %385 = vmatprep.subr.mxu0 0.0
      %386 = vmatpush1.msra.mxu0 0.0
      %387 = vmatprep.subr.mxu0 0.0
      %388 = vmatpush1.msra.mxu0 0.0
      %389 = vmatprep.subr.mxu0 0.0
      %390 = vmatpush1.msra.mxu0 0.0
      %391 = vmatprep.subr.mxu0 0.0
      %392 = vmatpush1.msra.mxu0 0.0
      %393 = vmatprep.subr.mxu0 0.0
      %394 = vmatpush1.msra.mxu0 0.0
      %395 = vmatprep.subr.mxu0 0.0
      %396 = vmatpush1.msra.mxu0 0.0
      %397 = vmatprep.subr.mxu0 0.0
      %398 = vmatpush1.msra.mxu0 0.0
      %399 = vmatprep.subr.mxu0 0.0
      %400 = vmatpush1.msra.mxu0 0.0
      %401 = vmatprep.subr.mxu0 0.0
      %402 = vmatpush1.msra.mxu0 0.0
      %403 = vmatprep.subr.mxu0 0.0
      %404 = vmatpush1.msra.mxu0 0.0
      %405 = vmatprep.subr.mxu0 0.0
      %406 = vmatpush1.msra.mxu0 0.0
      %407 = vmatprep.subr.mxu0 0.0
      %408 = vmatpush1.msra.mxu0 0.0
      %409 = vmatprep.subr.mxu0 0.0
      %410 = vmatpush1.msra.mxu0 0.0
      %411 = vmatprep.subr.mxu0 0.0
      %412 = vmatpush1.msra.mxu0 0.0
      %413 = vmatprep.subr.mxu0 0.0
      %414 = vmatpush1.msra.mxu0 0.0
      %415 = vmatprep.subr.mxu0 0.0
      %416 = vmatpush1.msra.mxu0 0.0
      %417 = vmatprep.subr.mxu0 0.0
      %418 = vmatpush1.msra.mxu0 0.0
      %419 = vmatprep.subr.mxu0 0.0
      %420 = vmatpush1.msra.mxu0 0.0
      %421 = vmatprep.subr.mxu0 0.0
      %422 = vmatpush1.msra.mxu0 0.0
      %423 = vmatprep.subr.mxu0 0.0
      %424 = vmatpush1.msra.mxu0 0.0
      %425 = vmatprep.subr.mxu0 0.0
      %426 = vmatpush1.msra.mxu0 0.0
      %427 = vmatprep.subr.mxu0 0.0
      %428 = vmatpush1.msra.mxu0 0.0
      %429 = vmatprep.subr.mxu0 0.0
      %430 = vmatpush1.msra.mxu0 0.0
      %431 = vmatprep.subr.mxu0 0.0
      %432 = vmatpush1.msra.mxu0 0.0
      %433 = vmatprep.subr.mxu0 0.0
      %434 = vmatpush1.msra.mxu0 0.0
      %435 = vmatprep.subr.mxu0 0.0
      %436 = vmatpush1.msra.mxu0 0.0
      %437 = vmatprep.subr.mxu0 0.0
      %438 = vmatpush1.msra.mxu0 0.0
      %439 = vmatprep.mubr.f32.mxu0 0.0
      %440 = vmatmul.mubr.f32.gmra.mrb[0].mxu0 %v370
      %v441 = vpop.f32.mrb[0].mxu0
      %v442 = vadd.f32 0.0, %v441
      %v443 = vpop.f32.mrb[0].mxu0
      %v444 = vadd.f32 0.0, %v443
      %445 = vmatprep.mubr.f32.mxu0 0.0
      %446 = vmatmul.mubr.f32.gmra.mrb[0].mxu0 %v373
      %v447 = vpop.f32.mrb[0].mxu0
      %v448 = vadd.f32 0.0, %v447
      %v449 = vpop.f32.mrb[0].mxu0
      %v450 = vadd.f32 0.0, %v449
      %451 = vdwg.mxu0
      %452 = vmatprep.subr.mxu0 %v335
      %453 = vmatpush1.msra.mxu0 %v334
      %454 = vmatprep.subr.mxu0 %v351
      %455 = vmatpush1.msra.mxu0 %v350
      %456 = vmatprep.subr.mxu0 0.0
      %457 = vmatpush1.msra.mxu0 0.0
      %458 = vmatprep.subr.mxu0 0.0
      %459 = vmatpush1.msra.mxu0 0.0
      %460 = vmatprep.subr.mxu0 0.0
      %461 = vmatpush1.msra.mxu0 0.0
      %462 = vmatprep.subr.mxu0 0.0
      %463 = vmatpush1.msra.mxu0 0.0
      %464 = vmatprep.subr.mxu0 0.0
      %465 = vmatpush1.msra.mxu0 0.0
      %466 = vmatprep.subr.mxu0 0.0
      %467 = vmatpush1.msra.mxu0 0.0
      %468 = vmatprep.subr.mxu0 0.0
      %469 = vmatpush1.msra.mxu0 0.0
      %470 = vmatprep.subr.mxu0 0.0
      %471 = vmatpush1.msra.mxu0 0.0
      %472 = vmatprep.subr.mxu0 0.0
      %473 = vmatpush1.msra.mxu0 0.0
      %474 = vmatprep.subr.mxu0 0.0
      %475 = vmatpush1.msra.mxu0 0.0
      %476 = vmatprep.subr.mxu0 0.0
      %477 = vmatpush1.msra.mxu0 0.0
      %478 = vmatprep.subr.mxu0 0.0
      %479 = vmatpush1.msra.mxu0 0.0
      %480 = vmatprep.subr.mxu0 0.0
      %481 = vmatpush1.msra.mxu0 0.0
      %482 = vmatprep.subr.mxu0 0.0
      %483 = vmatpush1.msra.mxu0 0.0
      %484 = vmatprep.subr.mxu0 0.0
      %485 = vmatpush1.msra.mxu0 0.0
      %486 = vmatprep.subr.mxu0 0.0
      %487 = vmatpush1.msra.mxu0 0.0
      %488 = vmatprep.subr.mxu0 0.0
      %489 = vmatpush1.msra.mxu0 0.0
      %490 = vmatprep.subr.mxu0 0.0
      %491 = vmatpush1.msra.mxu0 0.0
      %492 = vmatprep.subr.mxu0 0.0
      %493 = vmatpush1.msra.mxu0 0.0
      %494 = vmatprep.subr.mxu0 0.0
      %495 = vmatpush1.msra.mxu0 0.0
      %496 = vmatprep.subr.mxu0 0.0
      %497 = vmatpush1.msra.mxu0 0.0
      %498 = vmatprep.subr.mxu0 0.0
      %499 = vmatpush1.msra.mxu0 0.0
      %500 = vmatprep.subr.mxu0 0.0
      %501 = vmatpush1.msra.mxu0 0.0
      %502 = vmatprep.subr.mxu0 0.0
      %503 = vmatpush1.msra.mxu0 0.0
      %504 = vmatprep.subr.mxu0 0.0
      %505 = vmatpush1.msra.mxu0 0.0
      %506 = vmatprep.subr.mxu0 0.0
      %507 = vmatpush1.msra.mxu0 0.0
      %508 = vmatprep.subr.mxu0 0.0
      %509 = vmatpush1.msra.mxu0 0.0
      %510 = vmatprep.subr.mxu0 0.0
      %511 = vmatpush1.msra.mxu0 0.0
      %512 = vmatprep.subr.mxu0 0.0
      %513 = vmatpush1.msra.mxu0 0.0
      %514 = vmatprep.subr.mxu0 0.0
      %515 = vmatpush1.msra.mxu0 0.0
      %516 = vmatprep.mubr.f32.mxu0 0.0
      %517 = vmatmul.mubr.f32.gmra.mrb[0].mxu0 %v370
      %v518 = vpop.f32.mrb[0].mxu0
      %v519 = vadd.f32 0.0, %v518
      %v520 = vpop.f32.mrb[0].mxu0
      %v521 = vadd.f32 0.0, %v520
      %522 = vmatprep.mubr.f32.mxu0 0.0
      %523 = vmatmul.mubr.f32.gmra.mrb[0].mxu0 %v373
      %v524 = vpop.f32.mrb[0].mxu0
      %v525 = vadd.f32 0.0, %v524
      %v526 = vpop.f32.mrb[0].mxu0
      %v527 = vadd.f32 0.0, %v526
      %528 = vdwg.mxu0
      %529 = vmatprep.subr.mxu0 %v337
      %530 = vmatpush1.msra.mxu0 %v336
      %531 = vmatprep.subr.mxu0 %v353
      %532 = vmatpush1.msra.mxu0 %v352
      %533 = vmatprep.subr.mxu0 0.0
      %534 = vmatpush1.msra.mxu0 0.0
      %535 = vmatprep.subr.mxu0 0.0
      %536 = vmatpush1.msra.mxu0 0.0
      %537 = vmatprep.subr.mxu0 0.0
      %538 = vmatpush1.msra.mxu0 0.0
      %539 = vmatprep.subr.mxu0 0.0
      %540 = vmatpush1.msra.mxu0 0.0
      %541 = vmatprep.subr.mxu0 0.0
      %542 = vmatpush1.msra.mxu0 0.0
      %543 = vmatprep.subr.mxu0 0.0
      %544 = vmatpush1.msra.mxu0 0.0
      %545 = vmatprep.subr.mxu0 0.0
      %546 = vmatpush1.msra.mxu0 0.0
      %547 = vmatprep.subr.mxu0 0.0
      %548 = vmatpush1.msra.mxu0 0.0
      %549 = vmatprep.subr.mxu0 0.0
      %550 = vmatpush1.msra.mxu0 0.0
      %551 = vmatprep.subr.mxu0 0.0
      %552 = vmatpush1.msra.mxu0 0.0
      %553 = vmatprep.subr.mxu0 0.0
      %554 = vmatpush1.msra.mxu0 0.0
      %555 = vmatprep.subr.mxu0 0.0
      %556 = vmatpush1.msra.mxu0 0.0
      %557 = vmatprep.subr.mxu0 0.0
      %558 = vmatpush1.msra.mxu0 0.0
      %559 = vmatprep.subr.mxu0 0.0
      %560 = vmatpush1.msra.mxu0 0.0
      %561 = vmatprep.subr.mxu0 0.0
      %562 = vmatpush1.msra.mxu0 0.0
      %563 = vmatprep.subr.mxu0 0.0
      %564 = vmatpush1.msra.mxu0 0.0
      %565 = vmatprep.subr.mxu0 0.0
      %566 = vmatpush1.msra.mxu0 0.0
      %567 = vmatprep.subr.mxu0 0.0
      %568 = vmatpush1.msra.mxu0 0.0
      %569 = vmatprep.subr.mxu0 0.0
      %570 = vmatpush1.msra.mxu0 0.0
      %571 = vmatprep.subr.mxu0 0.0
      %572 = vmatpush1.msra.mxu0 0.0
      %573 = vmatprep.subr.mxu0 0.0
      %574 = vmatpush1.msra.mxu0 0.0
      %575 = vmatprep.subr.mxu0 0.0
      %576 = vmatpush1.msra.mxu0 0.0
      %577 = vmatprep.subr.mxu0 0.0
      %578 = vmatpush1.msra.mxu0 0.0
      %579 = vmatprep.subr.mxu0 0.0
      %580 = vmatpush1.msra.mxu0 0.0
      %581 = vmatprep.subr.mxu0 0.0
      %582 = vmatpush1.msra.mxu0 0.0
      %583 = vmatprep.subr.mxu0 0.0
      %584 = vmatpush1.msra.mxu0 0.0
      %585 = vmatprep.subr.mxu0 0.0
      %586 = vmatpush1.msra.mxu0 0.0
      %587 = vmatprep.subr.mxu0 0.0
      %588 = vmatpush1.msra.mxu0 0.0
      %589 = vmatprep.subr.mxu0 0.0
      %590 = vmatpush1.msra.mxu0 0.0
      %591 = vmatprep.subr.mxu0 0.0
      %592 = vmatpush1.msra.mxu0 0.0
      %593 = vmatprep.mubr.f32.mxu0 0.0
      %594 = vmatmul.mubr.f32.gmra.mrb[0].mxu0 %v370
      %v595 = vpop.f32.mrb[0].mxu0
      %v596 = vadd.f32 0.0, %v595
      %v597 = vpop.f32.mrb[0].mxu0
      %v598 = vadd.f32 0.0, %v597
      %599 = vmatprep.mubr.f32.mxu0 0.0
      %600 = vmatmul.mubr.f32.gmra.mrb[0].mxu0 %v373
      %v601 = vpop.f32.mrb[0].mxu0
      %v602 = vadd.f32 0.0, %v601
      %v603 = vpop.f32.mrb[0].mxu0
      %v604 = vadd.f32 0.0, %v603
      %605 = vdwg.mxu0
      %606 = vmatprep.subr.mxu0 %v339
      %607 = vmatpush1.msra.mxu0 %v338
      %608 = vmatprep.subr.mxu0 %v355
      %609 = vmatpush1.msra.mxu0 %v354
      %610 = vmatprep.subr.mxu0 0.0
      %611 = vmatpush1.msra.mxu0 0.0
      %612 = vmatprep.subr.mxu0 0.0
      %613 = vmatpush1.msra.mxu0 0.0
      %614 = vmatprep.subr.mxu0 0.0
      %615 = vmatpush1.msra.mxu0 0.0
      %616 = vmatprep.subr.mxu0 0.0
      %617 = vmatpush1.msra.mxu0 0.0
      %618 = vmatprep.subr.mxu0 0.0
      %619 = vmatpush1.msra.mxu0 0.0
      %620 = vmatprep.subr.mxu0 0.0
      %621 = vmatpush1.msra.mxu0 0.0
      %622 = vmatprep.subr.mxu0 0.0
      %623 = vmatpush1.msra.mxu0 0.0
      %624 = vmatprep.subr.mxu0 0.0
      %625 = vmatpush1.msra.mxu0 0.0
      %626 = vmatprep.subr.mxu0 0.0
      %627 = vmatpush1.msra.mxu0 0.0
      %628 = vmatprep.subr.mxu0 0.0
      %629 = vmatpush1.msra.mxu0 0.0
      %630 = vmatprep.subr.mxu0 0.0
      %631 = vmatpush1.msra.mxu0 0.0
      %632 = vmatprep.subr.mxu0 0.0
      %633 = vmatpush1.msra.mxu0 0.0
      %634 = vmatprep.subr.mxu0 0.0
      %635 = vmatpush1.msra.mxu0 0.0
      %636 = vmatprep.subr.mxu0 0.0
      %637 = vmatpush1.msra.mxu0 0.0
      %638 = vmatprep.subr.mxu0 0.0
      %639 = vmatpush1.msra.mxu0 0.0
      %640 = vmatprep.subr.mxu0 0.0
      %641 = vmatpush1.msra.mxu0 0.0
      %642 = vmatprep.subr.mxu0 0.0
      %643 = vmatpush1.msra.mxu0 0.0
      %644 = vmatprep.subr.mxu0 0.0
      %645 = vmatpush1.msra.mxu0 0.0
      %646 = vmatprep.subr.mxu0 0.0
      %647 = vmatpush1.msra.mxu0 0.0
      %648 = vmatprep.subr.mxu0 0.0
      %649 = vmatpush1.msra.mxu0 0.0
      %650 = vmatprep.subr.mxu0 0.0
      %651 = vmatpush1.msra.mxu0 0.0
      %652 = vmatprep.subr.mxu0 0.0
      %653 = vmatpush1.msra.mxu0 0.0
      %654 = vmatprep.subr.mxu0 0.0
      %655 = vmatpush1.msra.mxu0 0.0
      %656 = vmatprep.subr.mxu0 0.0
      %657 = vmatpush1.msra.mxu0 0.0
      %658 = vmatprep.subr.mxu0 0.0
      %659 = vmatpush1.msra.mxu0 0.0
      %660 = vmatprep.subr.mxu0 0.0
      %661 = vmatpush1.msra.mxu0 0.0
      %662 = vmatprep.subr.mxu0 0.0
      %663 = vmatpush1.msra.mxu0 0.0
      %664 = vmatprep.subr.mxu0 0.0
      %665 = vmatpush1.msra.mxu0 0.0
      %666 = vmatprep.subr.mxu0 0.0
      %667 = vmatpush1.msra.mxu0 0.0
      %668 = vmatprep.subr.mxu0 0.0
      %669 = vmatpush1.msra.mxu0 0.0
      %670 = vmatprep.mubr.f32.mxu0 0.0
      %671 = vmatmul.mubr.f32.gmra.mrb[0].mxu0 %v370
      %v672 = vpop.f32.mrb[0].mxu0
      %v673 = vadd.f32 0.0, %v672
      %v674 = vpop.f32.mrb[0].mxu0
      %v675 = vadd.f32 0.0, %v674
      %676 = vmatprep.mubr.f32.mxu0 0.0
      %677 = vmatmul.mubr.f32.gmra.mrb[0].mxu0 %v373
      %v678 = vpop.f32.mrb[0].mxu0
      %v679 = vadd.f32 0.0, %v678
      %v680 = vpop.f32.mrb[0].mxu0
      %v681 = vadd.f32 0.0, %v680
      %682 = vdwg.mxu0
      %683 = vmatprep.subr.mxu0 %v341
      %684 = vmatpush1.msra.mxu0 %v340
      %685 = vmatprep.subr.mxu0 %v357
      %686 = vmatpush1.msra.mxu0 %v356
      %687 = vmatprep.subr.mxu0 0.0
      %688 = vmatpush1.msra.mxu0 0.0
      %689 = vmatprep.subr.mxu0 0.0
      %690 = vmatpush1.msra.mxu0 0.0
      %691 = vmatprep.subr.mxu0 0.0
      %692 = vmatpush1.msra.mxu0 0.0
      %693 = vmatprep.subr.mxu0 0.0
      %694 = vmatpush1.msra.mxu0 0.0
      %695 = vmatprep.subr.mxu0 0.0
      %696 = vmatpush1.msra.mxu0 0.0
      %697 = vmatprep.subr.mxu0 0.0
      %698 = vmatpush1.msra.mxu0 0.0
      %699 = vmatprep.subr.mxu0 0.0
      %700 = vmatpush1.msra.mxu0 0.0
      %701 = vmatprep.subr.mxu0 0.0
      %702 = vmatpush1.msra.mxu0 0.0
      %703 = vmatprep.subr.mxu0 0.0
      %704 = vmatpush1.msra.mxu0 0.0
      %705 = vmatprep.subr.mxu0 0.0
      %706 = vmatpush1.msra.mxu0 0.0
      %707 = vmatprep.subr.mxu0 0.0
      %708 = vmatpush1.msra.mxu0 0.0
      %709 = vmatprep.subr.mxu0 0.0
      %710 = vmatpush1.msra.mxu0 0.0
      %711 = vmatprep.subr.mxu0 0.0
      %712 = vmatpush1.msra.mxu0 0.0
      %713 = vmatprep.subr.mxu0 0.0
      %714 = vmatpush1.msra.mxu0 0.0
      %715 = vmatprep.subr.mxu0 0.0
      %716 = vmatpush1.msra.mxu0 0.0
      %717 = vmatprep.subr.mxu0 0.0
      %718 = vmatpush1.msra.mxu0 0.0
      %719 = vmatprep.subr.mxu0 0.0
      %720 = vmatpush1.msra.mxu0 0.0
      %721 = vmatprep.subr.mxu0 0.0
      %722 = vmatpush1.msra.mxu0 0.0
      %723 = vmatprep.subr.mxu0 0.0
      %724 = vmatpush1.msra.mxu0 0.0
      %725 = vmatprep.subr.mxu0 0.0
      %726 = vmatpush1.msra.mxu0 0.0
      %727 = vmatprep.subr.mxu0 0.0
      %728 = vmatpush1.msra.mxu0 0.0
      %729 = vmatprep.subr.mxu0 0.0
      %730 = vmatpush1.msra.mxu0 0.0
      %731 = vmatprep.subr.mxu0 0.0
      %732 = vmatpush1.msra.mxu0 0.0
      %733 = vmatprep.subr.mxu0 0.0
      %734 = vmatpush1.msra.mxu0 0.0
      %735 = vmatprep.subr.mxu0 0.0
      %736 = vmatpush1.msra.mxu0 0.0
      %737 = vmatprep.subr.mxu0 0.0
      %738 = vmatpush1.msra.mxu0 0.0
      %739 = vmatprep.subr.mxu0 0.0
      %740 = vmatpush1.msra.mxu0 0.0
      %741 = vmatprep.subr.mxu0 0.0
      %742 = vmatpush1.msra.mxu0 0.0
      %743 = vmatprep.subr.mxu0 0.0
      %744 = vmatpush1.msra.mxu0 0.0
      %745 = vmatprep.subr.mxu0 0.0
      %746 = vmatpush1.msra.mxu0 0.0
      %747 = vmatprep.mubr.f32.mxu0 0.0
      %748 = vmatmul.mubr.f32.gmra.mrb[0].mxu0 %v370
      %v749 = vpop.f32.mrb[0].mxu0
      %v750 = vadd.f32 0.0, %v749
      %v751 = vpop.f32.mrb[0].mxu0
      %v752 = vadd.f32 0.0, %v751
      %753 = vmatprep.mubr.f32.mxu0 0.0
      %754 = vmatmul.mubr.f32.gmra.mrb[0].mxu0 %v373
      %v755 = vpop.f32.mrb[0].mxu0
      %v756 = vadd.f32 0.0, %v755
      %v757 = vpop.f32.mrb[0].mxu0
      %v758 = vadd.f32 0.0, %v757
      %759 = vdwg.mxu0
      %760 = vmatprep.subr.mxu0 %v343
      %761 = vmatpush1.msra.mxu0 %v342
      %762 = vmatprep.subr.mxu0 %v359
      %763 = vmatpush1.msra.mxu0 %v358
      %764 = vmatprep.subr.mxu0 0.0
      %765 = vmatpush1.msra.mxu0 0.0
      %766 = vmatprep.subr.mxu0 0.0
      %767 = vmatpush1.msra.mxu0 0.0
      %768 = vmatprep.subr.mxu0 0.0
      %769 = vmatpush1.msra.mxu0 0.0
      %770 = vmatprep.subr.mxu0 0.0
      %771 = vmatpush1.msra.mxu0 0.0
      %772 = vmatprep.subr.mxu0 0.0
      %773 = vmatpush1.msra.mxu0 0.0
      %774 = vmatprep.subr.mxu0 0.0
      %775 = vmatpush1.msra.mxu0 0.0
      %776 = vmatprep.subr.mxu0 0.0
      %777 = vmatpush1.msra.mxu0 0.0
      %778 = vmatprep.subr.mxu0 0.0
      %779 = vmatpush1.msra.mxu0 0.0
      %780 = vmatprep.subr.mxu0 0.0
      %781 = vmatpush1.msra.mxu0 0.0
      %782 = vmatprep.subr.mxu0 0.0
      %783 = vmatpush1.msra.mxu0 0.0
      %784 = vmatprep.subr.mxu0 0.0
      %785 = vmatpush1.msra.mxu0 0.0
      %786 = vmatprep.subr.mxu0 0.0
      %787 = vmatpush1.msra.mxu0 0.0
      %788 = vmatprep.subr.mxu0 0.0
      %789 = vmatpush1.msra.mxu0 0.0
      %790 = vmatprep.subr.mxu0 0.0
      %791 = vmatpush1.msra.mxu0 0.0
      %792 = vmatprep.subr.mxu0 0.0
      %793 = vmatpush1.msra.mxu0 0.0
      %794 = vmatprep.subr.mxu0 0.0
      %795 = vmatpush1.msra.mxu0 0.0
      %796 = vmatprep.subr.mxu0 0.0
      %797 = vmatpush1.msra.mxu0 0.0
      %798 = vmatprep.subr.mxu0 0.0
      %799 = vmatpush1.msra.mxu0 0.0
      %800 = vmatprep.subr.mxu0 0.0
      %801 = vmatpush1.msra.mxu0 0.0
      %802 = vmatprep.subr.mxu0 0.0
      %803 = vmatpush1.msra.mxu0 0.0
      %804 = vmatprep.subr.mxu0 0.0
      %805 = vmatpush1.msra.mxu0 0.0
      %806 = vmatprep.subr.mxu0 0.0
      %807 = vmatpush1.msra.mxu0 0.0
      %808 = vmatprep.subr.mxu0 0.0
      %809 = vmatpush1.msra.mxu0 0.0
      %810 = vmatprep.subr.mxu0 0.0
      %811 = vmatpush1.msra.mxu0 0.0
      %812 = vmatprep.subr.mxu0 0.0
      %813 = vmatpush1.msra.mxu0 0.0
      %814 = vmatprep.subr.mxu0 0.0
      %815 = vmatpush1.msra.mxu0 0.0
      %816 = vmatprep.subr.mxu0 0.0
      %817 = vmatpush1.msra.mxu0 0.0
      %818 = vmatprep.subr.mxu0 0.0
      %819 = vmatpush1.msra.mxu0 0.0
      %820 = vmatprep.subr.mxu0 0.0
      %821 = vmatpush1.msra.mxu0 0.0
      %822 = vmatprep.subr.mxu0 0.0
      %823 = vmatpush1.msra.mxu0 0.0
      %824 = vmatprep.mubr.f32.mxu0 0.0
      %825 = vmatmul.mubr.f32.gmra.mrb[0].mxu0 %v370
      %v826 = vpop.f32.mrb[0].mxu0
      %v827 = vadd.f32 0.0, %v826
      %v828 = vpop.f32.mrb[0].mxu0
      %v829 = vadd.f32 0.0, %v828
      %830 = vmatprep.mubr.f32.mxu0 0.0
      %831 = vmatmul.mubr.f32.gmra.mrb[0].mxu0 %v373
      %v832 = vpop.f32.mrb[0].mxu0
      %v833 = vadd.f32 0.0, %v832
      %v834 = vpop.f32.mrb[0].mxu0
      %v835 = vadd.f32 0.0, %v834
      %836 = vdwg.mxu0
      %837 = vmatprep.subr.mxu0 %v345
      %838 = vmatpush1.msra.mxu0 %v344
      %839 = vmatprep.subr.mxu0 %v361
      %840 = vmatpush1.msra.mxu0 %v360
      %841 = vmatprep.subr.mxu0 0.0
      %842 = vmatpush1.msra.mxu0 0.0
      %843 = vmatprep.subr.mxu0 0.0
      %844 = vmatpush1.msra.mxu0 0.0
      %845 = vmatprep.subr.mxu0 0.0
      %846 = vmatpush1.msra.mxu0 0.0
      %847 = vmatprep.subr.mxu0 0.0
      %848 = vmatpush1.msra.mxu0 0.0
      %849 = vmatprep.subr.mxu0 0.0
      %850 = vmatpush1.msra.mxu0 0.0
      %851 = vmatprep.subr.mxu0 0.0
      %852 = vmatpush1.msra.mxu0 0.0
      %853 = vmatprep.subr.mxu0 0.0
      %854 = vmatpush1.msra.mxu0 0.0
      %855 = vmatprep.subr.mxu0 0.0
      %856 = vmatpush1.msra.mxu0 0.0
      %857 = vmatprep.subr.mxu0 0.0
      %858 = vmatpush1.msra.mxu0 0.0
      %859 = vmatprep.subr.mxu0 0.0
      %860 = vmatpush1.msra.mxu0 0.0
      %861 = vmatprep.subr.mxu0 0.0
      %862 = vmatpush1.msra.mxu0 0.0
      %863 = vmatprep.subr.mxu0 0.0
      %864 = vmatpush1.msra.mxu0 0.0
      %865 = vmatprep.subr.mxu0 0.0
      %866 = vmatpush1.msra.mxu0 0.0
      %867 = vmatprep.subr.mxu0 0.0
      %868 = vmatpush1.msra.mxu0 0.0
      %869 = vmatprep.subr.mxu0 0.0
      %870 = vmatpush1.msra.mxu0 0.0
      %871 = vmatprep.subr.mxu0 0.0
      %872 = vmatpush1.msra.mxu0 0.0
      %873 = vmatprep.subr.mxu0 0.0
      %874 = vmatpush1.msra.mxu0 0.0
      %875 = vmatprep.subr.mxu0 0.0
      %876 = vmatpush1.msra.mxu0 0.0
      %877 = vmatprep.subr.mxu0 0.0
      %878 = vmatpush1.msra.mxu0 0.0
      %879 = vmatprep.subr.mxu0 0.0
      %880 = vmatpush1.msra.mxu0 0.0
      %881 = vmatprep.subr.mxu0 0.0
      %882 = vmatpush1.msra.mxu0 0.0
      %883 = vmatprep.subr.mxu0 0.0
      %884 = vmatpush1.msra.mxu0 0.0
      %885 = vmatprep.subr.mxu0 0.0
      %886 = vmatpush1.msra.mxu0 0.0
      %887 = vmatprep.subr.mxu0 0.0
      %888 = vmatpush1.msra.mxu0 0.0
      %889 = vmatprep.subr.mxu0 0.0
      %890 = vmatpush1.msra.mxu0 0.0
      %891 = vmatprep.subr.mxu0 0.0
      %892 = vmatpush1.msra.mxu0 0.0
      %893 = vmatprep.subr.mxu0 0.0
      %894 = vmatpush1.msra.mxu0 0.0
      %895 = vmatprep.subr.mxu0 0.0
      %896 = vmatpush1.msra.mxu0 0.0
      %897 = vmatprep.subr.mxu0 0.0
      %898 = vmatpush1.msra.mxu0 0.0
      %899 = vmatprep.subr.mxu0 0.0
      %900 = vmatpush1.msra.mxu0 0.0
      %901 = vmatprep.mubr.f32.mxu0 0.0
      %902 = vmatmul.mubr.f32.gmra.mrb[0].mxu0 %v370
      %v903 = vpop.f32.mrb[0].mxu0
      %v904 = vadd.f32 0.0, %v903
      %v905 = vpop.f32.mrb[0].mxu0
      %v906 = vadd.f32 0.0, %v905
      %907 = vmatprep.mubr.f32.mxu0 0.0
      %908 = vmatmul.mubr.f32.gmra.mrb[0].mxu0 %v373
      %v909 = vpop.f32.mrb[0].mxu0
      %v910 = vadd.f32 0.0, %v909
      %v911 = vpop.f32.mrb[0].mxu0
      %v912 = vadd.f32 0.0, %v911
      %913 = vdwg.mxu0
      %914 = vmatprep.subr.mxu0 %v347
      %915 = vmatpush1.msra.mxu0 %v346
      %916 = vmatprep.subr.mxu0 %v363
      %917 = vmatpush1.msra.mxu0 %v362
      %918 = vmatprep.subr.mxu0 0.0
      %919 = vmatpush1.msra.mxu0 0.0
      %920 = vmatprep.subr.mxu0 0.0
      %921 = vmatpush1.msra.mxu0 0.0
      %922 = vmatprep.subr.mxu0 0.0
      %923 = vmatpush1.msra.mxu0 0.0
      %924 = vmatprep.subr.mxu0 0.0
      %925 = vmatpush1.msra.mxu0 0.0
      %926 = vmatprep.subr.mxu0 0.0
      %927 = vmatpush1.msra.mxu0 0.0
      %928 = vmatprep.subr.mxu0 0.0
      %929 = vmatpush1.msra.mxu0 0.0
      %930 = vmatprep.subr.mxu0 0.0
      %931 = vmatpush1.msra.mxu0 0.0
      %932 = vmatprep.subr.mxu0 0.0
      %933 = vmatpush1.msra.mxu0 0.0
      %934 = vmatprep.subr.mxu0 0.0
      %935 = vmatpush1.msra.mxu0 0.0
      %936 = vmatprep.subr.mxu0 0.0
      %937 = vmatpush1.msra.mxu0 0.0
      %938 = vmatprep.subr.mxu0 0.0
      %939 = vmatpush1.msra.mxu0 0.0
      %940 = vmatprep.subr.mxu0 0.0
      %941 = vmatpush1.msra.mxu0 0.0
      %942 = vmatprep.subr.mxu0 0.0
      %943 = vmatpush1.msra.mxu0 0.0
      %944 = vmatprep.subr.mxu0 0.0
      %945 = vmatpush1.msra.mxu0 0.0
      %946 = vmatprep.subr.mxu0 0.0
      %947 = vmatpush1.msra.mxu0 0.0
      %948 = vmatprep.subr.mxu0 0.0
      %949 = vmatpush1.msra.mxu0 0.0
      %950 = vmatprep.subr.mxu0 0.0
      %951 = vmatpush1.msra.mxu0 0.0
      %952 = vmatprep.subr.mxu0 0.0
      %953 = vmatpush1.msra.mxu0 0.0
      %954 = vmatprep.subr.mxu0 0.0
      %955 = vmatpush1.msra.mxu0 0.0
      %956 = vmatprep.subr.mxu0 0.0
      %957 = vmatpush1.msra.mxu0 0.0
      %958 = vmatprep.subr.mxu0 0.0
      %959 = vmatpush1.msra.mxu0 0.0
      %960 = vmatprep.subr.mxu0 0.0
      %961 = vmatpush1.msra.mxu0 0.0
      %962 = vmatprep.subr.mxu0 0.0
      %963 = vmatpush1.msra.mxu0 0.0
      %964 = vmatprep.subr.mxu0 0.0
      %965 = vmatpush1.msra.mxu0 0.0
      %966 = vmatprep.subr.mxu0 0.0
      %967 = vmatpush1.msra.mxu0 0.0
      %968 = vmatprep.subr.mxu0 0.0
      %969 = vmatpush1.msra.mxu0 0.0
      %970 = vmatprep.subr.mxu0 0.0
      %971 = vmatpush1.msra.mxu0 0.0
      %972 = vmatprep.subr.mxu0 0.0
      %973 = vmatpush1.msra.mxu0 0.0
      %974 = vmatprep.subr.mxu0 0.0
      %975 = vmatpush1.msra.mxu0 0.0
      %976 = vmatprep.subr.mxu0 0.0
      %977 = vmatpush1.msra.mxu0 0.0
      %978 = vmatprep.mubr.f32.mxu0 0.0
      %979 = vmatmul.mubr.f32.gmra.mrb[0].mxu0 %v370
      %v980 = vpop.f32.mrb[0].mxu0
      %v981 = vadd.f32 0.0, %v980
      %v982 = vpop.f32.mrb[0].mxu0
      %v983 = vadd.f32 0.0, %v982
      %984 = vmatprep.mubr.f32.mxu0 0.0
      %985 = vmatmul.mubr.f32.gmra.mrb[0].mxu0 %v373
      %v986 = vpop.f32.mrb[0].mxu0
      %v987 = vadd.f32 0.0, %v986
      %v988 = vpop.f32.mrb[0].mxu0
      %v989 = vadd.f32 0.0, %v988
      %990 = vdwg.mxu0
      %v992 = vsel %vm368, %v364, 0
      %v995 = vsel %vm368, %v365, 0
      %997 = vmatprep.subr.mxu0 %v301
      %998 = vmatpush1.msra.mxu0 %v300
      %999 = vmatprep.subr.mxu0 %v317
      %1000 = vmatpush1.msra.mxu0 %v316
      %1001 = vmatprep.subr.mxu0 0.0
      %1002 = vmatpush1.msra.mxu0 0.0
      %1003 = vmatprep.subr.mxu0 0.0
      %1004 = vmatpush1.msra.mxu0 0.0
      %1005 = vmatprep.subr.mxu0 0.0
      %1006 = vmatpush1.msra.mxu0 0.0
      %1007 = vmatprep.subr.mxu0 0.0
      %1008 = vmatpush1.msra.mxu0 0.0
      %1009 = vmatprep.subr.mxu0 0.0
      %1010 = vmatpush1.msra.mxu0 0.0
      %1011 = vmatprep.subr.mxu0 0.0
      %1012 = vmatpush1.msra.mxu0 0.0
      %1013 = vmatprep.subr.mxu0 0.0
      %1014 = vmatpush1.msra.mxu0 0.0
      %1015 = vmatprep.subr.mxu0 0.0
      %1016 = vmatpush1.msra.mxu0 0.0
      %1017 = vmatprep.subr.mxu0 0.0
      %1018 = vmatpush1.msra.mxu0 0.0
      %1019 = vmatprep.subr.mxu0 0.0
      %1020 = vmatpush1.msra.mxu0 0.0
      %1021 = vmatprep.subr.mxu0 0.0
      %1022 = vmatpush1.msra.mxu0 0.0
      %1023 = vmatprep.subr.mxu0 0.0
      %1024 = vmatpush1.msra.mxu0 0.0
      %1025 = vmatprep.subr.mxu0 0.0
      %1026 = vmatpush1.msra.mxu0 0.0
      %1027 = vmatprep.subr.mxu0 0.0
      %1028 = vmatpush1.msra.mxu0 0.0
      %1029 = vmatprep.subr.mxu0 0.0
      %1030 = vmatpush1.msra.mxu0 0.0
      %1031 = vmatprep.subr.mxu0 0.0
      %1032 = vmatpush1.msra.mxu0 0.0
      %1033 = vmatprep.subr.mxu0 0.0
      %1034 = vmatpush1.msra.mxu0 0.0
      %1035 = vmatprep.subr.mxu0 0.0
      %1036 = vmatpush1.msra.mxu0 0.0
      %1037 = vmatprep.subr.mxu0 0.0
      %1038 = vmatpush1.msra.mxu0 0.0
      %1039 = vmatprep.subr.mxu0 0.0
      %1040 = vmatpush1.msra.mxu0 0.0
      %1041 = vmatprep.subr.mxu0 0.0
      %1042 = vmatpush1.msra.mxu0 0.0
      %1043 = vmatprep.subr.mxu0 0.0
      %1044 = vmatpush1.msra.mxu0 0.0
      %1045 = vmatprep.subr.mxu0 0.0
      %1046 = vmatpush1.msra.mxu0 0.0
      %1047 = vmatprep.subr.mxu0 0.0
      %1048 = vmatpush1.msra.mxu0 0.0
      %1049 = vmatprep.subr.mxu0 0.0
      %1050 = vmatpush1.msra.mxu0 0.0
      %1051 = vmatprep.subr.mxu0 0.0
      %1052 = vmatpush1.msra.mxu0 0.0
      %1053 = vmatprep.subr.mxu0 0.0
      %1054 = vmatpush1.msra.mxu0 0.0
      %1055 = vmatprep.subr.mxu0 0.0
      %1056 = vmatpush1.msra.mxu0 0.0
      %1057 = vmatprep.subr.mxu0 0.0
      %1058 = vmatpush1.msra.mxu0 0.0
      %1059 = vmatprep.subr.mxu0 0.0
      %1060 = vmatpush1.msra.mxu0 0.0
      %1061 = vmatprep.mubr.f32.mxu0 0.0
      %1062 = vmatmul.mubr.f32.gmra.mrb[0].mxu0 %v992
      %v1063 = vpop.f32.mrb[0].mxu0
      %v1064 = vadd.f32 %v442, %v1063
      %v1065 = vpop.f32.mrb[0].mxu0
      %v1066 = vadd.f32 %v444, %v1065
      %1067 = vmatprep.mubr.f32.mxu0 0.0
      %1068 = vmatmul.mubr.f32.gmra.mrb[0].mxu0 %v995
      %v1069 = vpop.f32.mrb[0].mxu0
      %v1070 = vadd.f32 %v448, %v1069
      %v1071 = vpop.f32.mrb[0].mxu0
      %v1072 = vadd.f32 %v450, %v1071
      %1073 = vdwg.mxu0
      %1074 = vmatprep.subr.mxu0 %v303
      %1075 = vmatpush1.msra.mxu0 %v302
      %1076 = vmatprep.subr.mxu0 %v319
      %1077 = vmatpush1.msra.mxu0 %v318
      %1078 = vmatprep.subr.mxu0 0.0
      %1079 = vmatpush1.msra.mxu0 0.0
      %1080 = vmatprep.subr.mxu0 0.0
      %1081 = vmatpush1.msra.mxu0 0.0
      %1082 = vmatprep.subr.mxu0 0.0
      %1083 = vmatpush1.msra.mxu0 0.0
      %1084 = vmatprep.subr.mxu0 0.0
      %1085 = vmatpush1.msra.mxu0 0.0
      %1086 = vmatprep.subr.mxu0 0.0
      %1087 = vmatpush1.msra.mxu0 0.0
      %1088 = vmatprep.subr.mxu0 0.0
      %1089 = vmatpush1.msra.mxu0 0.0
      %1090 = vmatprep.subr.mxu0 0.0
      %1091 = vmatpush1.msra.mxu0 0.0
      %1092 = vmatprep.subr.mxu0 0.0
      %1093 = vmatpush1.msra.mxu0 0.0
      %1094 = vmatprep.subr.mxu0 0.0
      %1095 = vmatpush1.msra.mxu0 0.0
      %1096 = vmatprep.subr.mxu0 0.0
      %1097 = vmatpush1.msra.mxu0 0.0
      %1098 = vmatprep.subr.mxu0 0.0
      %1099 = vmatpush1.msra.mxu0 0.0
      %1100 = vmatprep.subr.mxu0 0.0
      %1101 = vmatpush1.msra.mxu0 0.0
      %1102 = vmatprep.subr.mxu0 0.0
      %1103 = vmatpush1.msra.mxu0 0.0
      %1104 = vmatprep.subr.mxu0 0.0
      %1105 = vmatpush1.msra.mxu0 0.0
      %1106 = vmatprep.subr.mxu0 0.0
      %1107 = vmatpush1.msra.mxu0 0.0
      %1108 = vmatprep.subr.mxu0 0.0
      %1109 = vmatpush1.msra.mxu0 0.0
      %1110 = vmatprep.subr.mxu0 0.0
      %1111 = vmatpush1.msra.mxu0 0.0
      %1112 = vmatprep.subr.mxu0 0.0
      %1113 = vmatpush1.msra.mxu0 0.0
      %1114 = vmatprep.subr.mxu0 0.0
      %1115 = vmatpush1.msra.mxu0 0.0
      %1116 = vmatprep.subr.mxu0 0.0
      %1117 = vmatpush1.msra.mxu0 0.0
      %1118 = vmatprep.subr.mxu0 0.0
      %1119 = vmatpush1.msra.mxu0 0.0
      %1120 = vmatprep.subr.mxu0 0.0
      %1121 = vmatpush1.msra.mxu0 0.0
      %1122 = vmatprep.subr.mxu0 0.0
      %1123 = vmatpush1.msra.mxu0 0.0
      %1124 = vmatprep.subr.mxu0 0.0
      %1125 = vmatpush1.msra.mxu0 0.0
      %1126 = vmatprep.subr.mxu0 0.0
      %1127 = vmatpush1.msra.mxu0 0.0
      %1128 = vmatprep.subr.mxu0 0.0
      %1129 = vmatpush1.msra.mxu0 0.0
      %1130 = vmatprep.subr.mxu0 0.0
      %1131 = vmatpush1.msra.mxu0 0.0
      %1132 = vmatprep.subr.mxu0 0.0
      %1133 = vmatpush1.msra.mxu0 0.0
      %1134 = vmatprep.subr.mxu0 0.0
      %1135 = vmatpush1.msra.mxu0 0.0
      %1136 = vmatprep.subr.mxu0 0.0
      %1137 = vmatpush1.msra.mxu0 0.0
      %1138 = vmatprep.mubr.f32.mxu0 0.0
      %1139 = vmatmul.mubr.f32.gmra.mrb[0].mxu0 %v992
      %v1140 = vpop.f32.mrb[0].mxu0
      %v1141 = vadd.f32 %v519, %v1140
      %v1142 = vpop.f32.mrb[0].mxu0
      %v1143 = vadd.f32 %v521, %v1142
      %1144 = vmatprep.mubr.f32.mxu0 0.0
      %1145 = vmatmul.mubr.f32.gmra.mrb[0].mxu0 %v995
      %v1146 = vpop.f32.mrb[0].mxu0
      %v1147 = vadd.f32 %v525, %v1146
      %v1148 = vpop.f32.mrb[0].mxu0
      %v1149 = vadd.f32 %v527, %v1148
      %1150 = vdwg.mxu0
      %1151 = vmatprep.subr.mxu0 %v305
      %1152 = vmatpush1.msra.mxu0 %v304
      %1153 = vmatprep.subr.mxu0 %v321
      %1154 = vmatpush1.msra.mxu0 %v320
      %1155 = vmatprep.subr.mxu0 0.0
      %1156 = vmatpush1.msra.mxu0 0.0
      %1157 = vmatprep.subr.mxu0 0.0
      %1158 = vmatpush1.msra.mxu0 0.0
      %1159 = vmatprep.subr.mxu0 0.0
      %1160 = vmatpush1.msra.mxu0 0.0
      %1161 = vmatprep.subr.mxu0 0.0
      %1162 = vmatpush1.msra.mxu0 0.0
      %1163 = vmatprep.subr.mxu0 0.0
      %1164 = vmatpush1.msra.mxu0 0.0
      %1165 = vmatprep.subr.mxu0 0.0
      %1166 = vmatpush1.msra.mxu0 0.0
      %1167 = vmatprep.subr.mxu0 0.0
      %1168 = vmatpush1.msra.mxu0 0.0
      %1169 = vmatprep.subr.mxu0 0.0
      %1170 = vmatpush1.msra.mxu0 0.0
      %1171 = vmatprep.subr.mxu0 0.0
      %1172 = vmatpush1.msra.mxu0 0.0
      %1173 = vmatprep.subr.mxu0 0.0
      %1174 = vmatpush1.msra.mxu0 0.0
      %1175 = vmatprep.subr.mxu0 0.0
      %1176 = vmatpush1.msra.mxu0 0.0
      %1177 = vmatprep.subr.mxu0 0.0
      %1178 = vmatpush1.msra.mxu0 0.0
      %1179 = vmatprep.subr.mxu0 0.0
      %1180 = vmatpush1.msra.mxu0 0.0
      %1181 = vmatprep.subr.mxu0 0.0
      %1182 = vmatpush1.msra.mxu0 0.0
      %1183 = vmatprep.subr.mxu0 0.0
      %1184 = vmatpush1.msra.mxu0 0.0
      %1185 = vmatprep.subr.mxu0 0.0
      %1186 = vmatpush1.msra.mxu0 0.0
      %1187 = vmatprep.subr.mxu0 0.0
      %1188 = vmatpush1.msra.mxu0 0.0
      %1189 = vmatprep.subr.mxu0 0.0
      %1190 = vmatpush1.msra.mxu0 0.0
      %1191 = vmatprep.subr.mxu0 0.0
      %1192 = vmatpush1.msra.mxu0 0.0
      %1193 = vmatprep.subr.mxu0 0.0
      %1194 = vmatpush1.msra.mxu0 0.0
      %1195 = vmatprep.subr.mxu0 0.0
      %1196 = vmatpush1.msra.mxu0 0.0
      %1197 = vmatprep.subr.mxu0 0.0
      %1198 = vmatpush1.msra.mxu0 0.0
      %1199 = vmatprep.subr.mxu0 0.0
      %1200 = vmatpush1.msra.mxu0 0.0
      %1201 = vmatprep.subr.mxu0 0.0
      %1202 = vmatpush1.msra.mxu0 0.0
      %1203 = vmatprep.subr.mxu0 0.0
      %1204 = vmatpush1.msra.mxu0 0.0
      %1205 = vmatprep.subr.mxu0 0.0
      %1206 = vmatpush1.msra.mxu0 0.0
      %1207 = vmatprep.subr.mxu0 0.0
      %1208 = vmatpush1.msra.mxu0 0.0
      %1209 = vmatprep.subr.mxu0 0.0
      %1210 = vmatpush1.msra.mxu0 0.0
      %1211 = vmatprep.subr.mxu0 0.0
      %1212 = vmatpush1.msra.mxu0 0.0
      %1213 = vmatprep.subr.mxu0 0.0
      %1214 = vmatpush1.msra.mxu0 0.0
      %1215 = vmatprep.mubr.f32.mxu0 0.0
      %1216 = vmatmul.mubr.f32.gmra.mrb[0].mxu0 %v992
      %v1217 = vpop.f32.mrb[0].mxu0
      %v1218 = vadd.f32 %v596, %v1217
      %v1219 = vpop.f32.mrb[0].mxu0
      %v1220 = vadd.f32 %v598, %v1219
      %1221 = vmatprep.mubr.f32.mxu0 0.0
      %1222 = vmatmul.mubr.f32.gmra.mrb[0].mxu0 %v995
      %v1223 = vpop.f32.mrb[0].mxu0
      %v1224 = vadd.f32 %v602, %v1223
      %v1225 = vpop.f32.mrb[0].mxu0
      %v1226 = vadd.f32 %v604, %v1225
      %1227 = vdwg.mxu0
      %1228 = vmatprep.subr.mxu0 %v307
      %1229 = vmatpush1.msra.mxu0 %v306
      %1230 = vmatprep.subr.mxu0 %v323
      %1231 = vmatpush1.msra.mxu0 %v322
      %1232 = vmatprep.subr.mxu0 0.0
      %1233 = vmatpush1.msra.mxu0 0.0
      %1234 = vmatprep.subr.mxu0 0.0
      %1235 = vmatpush1.msra.mxu0 0.0
      %1236 = vmatprep.subr.mxu0 0.0
      %1237 = vmatpush1.msra.mxu0 0.0
      %1238 = vmatprep.subr.mxu0 0.0
      %1239 = vmatpush1.msra.mxu0 0.0
      %1240 = vmatprep.subr.mxu0 0.0
      %1241 = vmatpush1.msra.mxu0 0.0
      %1242 = vmatprep.subr.mxu0 0.0
      %1243 = vmatpush1.msra.mxu0 0.0
      %1244 = vmatprep.subr.mxu0 0.0
      %1245 = vmatpush1.msra.mxu0 0.0
      %1246 = vmatprep.subr.mxu0 0.0
      %1247 = vmatpush1.msra.mxu0 0.0
      %1248 = vmatprep.subr.mxu0 0.0
      %1249 = vmatpush1.msra.mxu0 0.0
      %1250 = vmatprep.subr.mxu0 0.0
      %1251 = vmatpush1.msra.mxu0 0.0
      %1252 = vmatprep.subr.mxu0 0.0
      %1253 = vmatpush1.msra.mxu0 0.0
      %1254 = vmatprep.subr.mxu0 0.0
      %1255 = vmatpush1.msra.mxu0 0.0
      %1256 = vmatprep.subr.mxu0 0.0
      %1257 = vmatpush1.msra.mxu0 0.0
      %1258 = vmatprep.subr.mxu0 0.0
      %1259 = vmatpush1.msra.mxu0 0.0
      %1260 = vmatprep.subr.mxu0 0.0
      %1261 = vmatpush1.msra.mxu0 0.0
      %1262 = vmatprep.subr.mxu0 0.0
      %1263 = vmatpush1.msra.mxu0 0.0
      %1264 = vmatprep.subr.mxu0 0.0
      %1265 = vmatpush1.msra.mxu0 0.0
      %1266 = vmatprep.subr.mxu0 0.0
      %1267 = vmatpush1.msra.mxu0 0.0
      %1268 = vmatprep.subr.mxu0 0.0
      %1269 = vmatpush1.msra.mxu0 0.0
      %1270 = vmatprep.subr.mxu0 0.0
      %1271 = vmatpush1.msra.mxu0 0.0
      %1272 = vmatprep.subr.mxu0 0.0
      %1273 = vmatpush1.msra.mxu0 0.0
      %1274 = vmatprep.subr.mxu0 0.0
      %1275 = vmatpush1.msra.mxu0 0.0
      %1276 = vmatprep.subr.mxu0 0.0
      %1277 = vmatpush1.msra.mxu0 0.0
      %1278 = vmatprep.subr.mxu0 0.0
      %1279 = vmatpush1.msra.mxu0 0.0
      %1280 = vmatprep.subr.mxu0 0.0
      %1281 = vmatpush1.msra.mxu0 0.0
      %1282 = vmatprep.subr.mxu0 0.0
      %1283 = vmatpush1.msra.mxu0 0.0
      %1284 = vmatprep.subr.mxu0 0.0
      %1285 = vmatpush1.msra.mxu0 0.0
      %1286 = vmatprep.subr.mxu0 0.0
      %1287 = vmatpush1.msra.mxu0 0.0
      %1288 = vmatprep.subr.mxu0 0.0
      %1289 = vmatpush1.msra.mxu0 0.0
      %1290 = vmatprep.subr.mxu0 0.0
      %1291 = vmatpush1.msra.mxu0 0.0
      %1292 = vmatprep.mubr.f32.mxu0 0.0
      %1293 = vmatmul.mubr.f32.gmra.mrb[0].mxu0 %v992
      %v1294 = vpop.f32.mrb[0].mxu0
      %v1295 = vadd.f32 %v673, %v1294
      %v1296 = vpop.f32.mrb[0].mxu0
      %v1297 = vadd.f32 %v675, %v1296
      %1298 = vmatprep.mubr.f32.mxu0 0.0
      %1299 = vmatmul.mubr.f32.gmra.mrb[0].mxu0 %v995
      %v1300 = vpop.f32.mrb[0].mxu0
      %v1301 = vadd.f32 %v679, %v1300
      %v1302 = vpop.f32.mrb[0].mxu0
      %v1303 = vadd.f32 %v681, %v1302
      %1304 = vdwg.mxu0
      %1305 = vmatprep.subr.mxu0 %v309
      %1306 = vmatpush1.msra.mxu0 %v308
      %1307 = vmatprep.subr.mxu0 %v325
      %1308 = vmatpush1.msra.mxu0 %v324
      %1309 = vmatprep.subr.mxu0 0.0
      %1310 = vmatpush1.msra.mxu0 0.0
      %1311 = vmatprep.subr.mxu0 0.0
      %1312 = vmatpush1.msra.mxu0 0.0
      %1313 = vmatprep.subr.mxu0 0.0
      %1314 = vmatpush1.msra.mxu0 0.0
      %1315 = vmatprep.subr.mxu0 0.0
      %1316 = vmatpush1.msra.mxu0 0.0
      %1317 = vmatprep.subr.mxu0 0.0
      %1318 = vmatpush1.msra.mxu0 0.0
      %1319 = vmatprep.subr.mxu0 0.0
      %1320 = vmatpush1.msra.mxu0 0.0
      %1321 = vmatprep.subr.mxu0 0.0
      %1322 = vmatpush1.msra.mxu0 0.0
      %1323 = vmatprep.subr.mxu0 0.0
      %1324 = vmatpush1.msra.mxu0 0.0
      %1325 = vmatprep.subr.mxu0 0.0
      %1326 = vmatpush1.msra.mxu0 0.0
      %1327 = vmatprep.subr.mxu0 0.0
      %1328 = vmatpush1.msra.mxu0 0.0
      %1329 = vmatprep.subr.mxu0 0.0
      %1330 = vmatpush1.msra.mxu0 0.0
      %1331 = vmatprep.subr.mxu0 0.0
      %1332 = vmatpush1.msra.mxu0 0.0
      %1333 = vmatprep.subr.mxu0 0.0
      %1334 = vmatpush1.msra.mxu0 0.0
      %1335 = vmatprep.subr.mxu0 0.0
      %1336 = vmatpush1.msra.mxu0 0.0
      %1337 = vmatprep.subr.mxu0 0.0
      %1338 = vmatpush1.msra.mxu0 0.0
      %1339 = vmatprep.subr.mxu0 0.0
      %1340 = vmatpush1.msra.mxu0 0.0
      %1341 = vmatprep.subr.mxu0 0.0
      %1342 = vmatpush1.msra.mxu0 0.0
      %1343 = vmatprep.subr.mxu0 0.0
      %1344 = vmatpush1.msra.mxu0 0.0
      %1345 = vmatprep.subr.mxu0 0.0
      %1346 = vmatpush1.msra.mxu0 0.0
      %1347 = vmatprep.subr.mxu0 0.0
      %1348 = vmatpush1.msra.mxu0 0.0
      %1349 = vmatprep.subr.mxu0 0.0
      %1350 = vmatpush1.msra.mxu0 0.0
      %1351 = vmatprep.subr.mxu0 0.0
      %1352 = vmatpush1.msra.mxu0 0.0
      %1353 = vmatprep.subr.mxu0 0.0
      %1354 = vmatpush1.msra.mxu0 0.0
      %1355 = vmatprep.subr.mxu0 0.0
      %1356 = vmatpush1.msra.mxu0 0.0
      %1357 = vmatprep.subr.mxu0 0.0
      %1358 = vmatpush1.msra.mxu0 0.0
      %1359 = vmatprep.subr.mxu0 0.0
      %1360 = vmatpush1.msra.mxu0 0.0
      %1361 = vmatprep.subr.mxu0 0.0
      %1362 = vmatpush1.msra.mxu0 0.0
      %1363 = vmatprep.subr.mxu0 0.0
      %1364 = vmatpush1.msra.mxu0 0.0
      %1365 = vmatprep.subr.mxu0 0.0
      %1366 = vmatpush1.msra.mxu0 0.0
      %1367 = vmatprep.subr.mxu0 0.0
      %1368 = vmatpush1.msra.mxu0 0.0
      %1369 = vmatprep.mubr.f32.mxu0 0.0
      %1370 = vmatmul.mubr.f32.gmra.mrb[0].mxu0 %v992
      %v1371 = vpop.f32.mrb[0].mxu0
      %v1372 = vadd.f32 %v750, %v1371
      %v1373 = vpop.f32.mrb[0].mxu0
      %v1374 = vadd.f32 %v752, %v1373
      %1375 = vmatprep.mubr.f32.mxu0 0.0
      %1376 = vmatmul.mubr.f32.gmra.mrb[0].mxu0 %v995
      %v1377 = vpop.f32.mrb[0].mxu0
      %v1378 = vadd.f32 %v756, %v1377
      %v1379 = vpop.f32.mrb[0].mxu0
      %v1380 = vadd.f32 %v758, %v1379
      %1381 = vdwg.mxu0
      %1382 = vmatprep.subr.mxu0 %v311
      %1383 = vmatpush1.msra.mxu0 %v310
      %1384 = vmatprep.subr.mxu0 %v327
      %1385 = vmatpush1.msra.mxu0 %v326
      %1386 = vmatprep.subr.mxu0 0.0
      %1387 = vmatpush1.msra.mxu0 0.0
      %1388 = vmatprep.subr.mxu0 0.0
      %1389 = vmatpush1.msra.mxu0 0.0
      %1390 = vmatprep.subr.mxu0 0.0
      %1391 = vmatpush1.msra.mxu0 0.0
      %1392 = vmatprep.subr.mxu0 0.0
      %1393 = vmatpush1.msra.mxu0 0.0
      %1394 = vmatprep.subr.mxu0 0.0
      %1395 = vmatpush1.msra.mxu0 0.0
      %1396 = vmatprep.subr.mxu0 0.0
      %1397 = vmatpush1.msra.mxu0 0.0
      %1398 = vmatprep.subr.mxu0 0.0
      %1399 = vmatpush1.msra.mxu0 0.0
      %1400 = vmatprep.subr.mxu0 0.0
      %1401 = vmatpush1.msra.mxu0 0.0
      %1402 = vmatprep.subr.mxu0 0.0
      %1403 = vmatpush1.msra.mxu0 0.0
      %1404 = vmatprep.subr.mxu0 0.0
      %1405 = vmatpush1.msra.mxu0 0.0
      %1406 = vmatprep.subr.mxu0 0.0
      %1407 = vmatpush1.msra.mxu0 0.0
      %1408 = vmatprep.subr.mxu0 0.0
      %1409 = vmatpush1.msra.mxu0 0.0
      %1410 = vmatprep.subr.mxu0 0.0
      %1411 = vmatpush1.msra.mxu0 0.0
      %1412 = vmatprep.subr.mxu0 0.0
      %1413 = vmatpush1.msra.mxu0 0.0
      %1414 = vmatprep.subr.mxu0 0.0
      %1415 = vmatpush1.msra.mxu0 0.0
      %1416 = vmatprep.subr.mxu0 0.0
      %1417 = vmatpush1.msra.mxu0 0.0
      %1418 = vmatprep.subr.mxu0 0.0
      %1419 = vmatpush1.msra.mxu0 0.0
      %1420 = vmatprep.subr.mxu0 0.0
      %1421 = vmatpush1.msra.mxu0 0.0
      %1422 = vmatprep.subr.mxu0 0.0
      %1423 = vmatpush1.msra.mxu0 0.0
      %1424 = vmatprep.subr.mxu0 0.0
      %1425 = vmatpush1.msra.mxu0 0.0
      %1426 = vmatprep.subr.mxu0 0.0
      %1427 = vmatpush1.msra.mxu0 0.0
      %1428 = vmatprep.subr.mxu0 0.0
      %1429 = vmatpush1.msra.mxu0 0.0
      %1430 = vmatprep.subr.mxu0 0.0
      %1431 = vmatpush1.msra.mxu0 0.0
      %1432 = vmatprep.subr.mxu0 0.0
      %1433 = vmatpush1.msra.mxu0 0.0
      %1434 = vmatprep.subr.mxu0 0.0
      %1435 = vmatpush1.msra.mxu0 0.0
      %1436 = vmatprep.subr.mxu0 0.0
      %1437 = vmatpush1.msra.mxu0 0.0
      %1438 = vmatprep.subr.mxu0 0.0
      %1439 = vmatpush1.msra.mxu0 0.0
      %1440 = vmatprep.subr.mxu0 0.0
      %1441 = vmatpush1.msra.mxu0 0.0
      %1442 = vmatprep.subr.mxu0 0.0
      %1443 = vmatpush1.msra.mxu0 0.0
      %1444 = vmatprep.subr.mxu0 0.0
      %1445 = vmatpush1.msra.mxu0 0.0
      %1446 = vmatprep.mubr.f32.mxu0 0.0
      %1447 = vmatmul.mubr.f32.gmra.mrb[0].mxu0 %v992
      %v1448 = vpop.f32.mrb[0].mxu0
      %v1449 = vadd.f32 %v827, %v1448
      %v1450 = vpop.f32.mrb[0].mxu0
      %v1451 = vadd.f32 %v829, %v1450
      %1452 = vmatprep.mubr.f32.mxu0 0.0
      %1453 = vmatmul.mubr.f32.gmra.mrb[0].mxu0 %v995
      %v1454 = vpop.f32.mrb[0].mxu0
      %v1455 = vadd.f32 %v833, %v1454
      %v1456 = vpop.f32.mrb[0].mxu0
      %v1457 = vadd.f32 %v835, %v1456
      %1458 = vdwg.mxu0
      %1459 = vmatprep.subr.mxu0 %v313
      %1460 = vmatpush1.msra.mxu0 %v312
      %1461 = vmatprep.subr.mxu0 %v329
      %1462 = vmatpush1.msra.mxu0 %v328
      %1463 = vmatprep.subr.mxu0 0.0
      %1464 = vmatpush1.msra.mxu0 0.0
      %1465 = vmatprep.subr.mxu0 0.0
      %1466 = vmatpush1.msra.mxu0 0.0
      %1467 = vmatprep.subr.mxu0 0.0
      %1468 = vmatpush1.msra.mxu0 0.0
      %1469 = vmatprep.subr.mxu0 0.0
      %1470 = vmatpush1.msra.mxu0 0.0
      %1471 = vmatprep.subr.mxu0 0.0
      %1472 = vmatpush1.msra.mxu0 0.0
      %1473 = vmatprep.subr.mxu0 0.0
      %1474 = vmatpush1.msra.mxu0 0.0
      %1475 = vmatprep.subr.mxu0 0.0
      %1476 = vmatpush1.msra.mxu0 0.0
      %1477 = vmatprep.subr.mxu0 0.0
      %1478 = vmatpush1.msra.mxu0 0.0
      %1479 = vmatprep.subr.mxu0 0.0
      %1480 = vmatpush1.msra.mxu0 0.0
      %1481 = vmatprep.subr.mxu0 0.0
      %1482 = vmatpush1.msra.mxu0 0.0
      %1483 = vmatprep.subr.mxu0 0.0
      %1484 = vmatpush1.msra.mxu0 0.0
      %1485 = vmatprep.subr.mxu0 0.0
      %1486 = vmatpush1.msra.mxu0 0.0
      %1487 = vmatprep.subr.mxu0 0.0
      %1488 = vmatpush1.msra.mxu0 0.0
      %1489 = vmatprep.subr.mxu0 0.0
      %1490 = vmatpush1.msra.mxu0 0.0
      %1491 = vmatprep.subr.mxu0 0.0
      %1492 = vmatpush1.msra.mxu0 0.0
      %1493 = vmatprep.subr.mxu0 0.0
      %1494 = vmatpush1.msra.mxu0 0.0
      %1495 = vmatprep.subr.mxu0 0.0
      %1496 = vmatpush1.msra.mxu0 0.0
      %1497 = vmatprep.subr.mxu0 0.0
      %1498 = vmatpush1.msra.mxu0 0.0
      %1499 = vmatprep.subr.mxu0 0.0
      %1500 = vmatpush1.msra.mxu0 0.0
      %1501 = vmatprep.subr.mxu0 0.0
      %1502 = vmatpush1.msra.mxu0 0.0
      %1503 = vmatprep.subr.mxu0 0.0
      %1504 = vmatpush1.msra.mxu0 0.0
      %1505 = vmatprep.subr.mxu0 0.0
      %1506 = vmatpush1.msra.mxu0 0.0
      %1507 = vmatprep.subr.mxu0 0.0
      %1508 = vmatpush1.msra.mxu0 0.0
      %1509 = vmatprep.subr.mxu0 0.0
      %1510 = vmatpush1.msra.mxu0 0.0
      %1511 = vmatprep.subr.mxu0 0.0
      %1512 = vmatpush1.msra.mxu0 0.0
      %1513 = vmatprep.subr.mxu0 0.0
      %1514 = vmatpush1.msra.mxu0 0.0
      %1515 = vmatprep.subr.mxu0 0.0
      %1516 = vmatpush1.msra.mxu0 0.0
      %1517 = vmatprep.subr.mxu0 0.0
      %1518 = vmatpush1.msra.mxu0 0.0
      %1519 = vmatprep.subr.mxu0 0.0
      %1520 = vmatpush1.msra.mxu0 0.0
      %1521 = vmatprep.subr.mxu0 0.0
      %1522 = vmatpush1.msra.mxu0 0.0
      %1523 = vmatprep.mubr.f32.mxu0 0.0
      %1524 = vmatmul.mubr.f32.gmra.mrb[0].mxu0 %v992
      %v1525 = vpop.f32.mrb[0].mxu0
      %v1526 = vadd.f32 %v904, %v1525
      %v1527 = vpop.f32.mrb[0].mxu0
      %v1528 = vadd.f32 %v906, %v1527
      %1529 = vmatprep.mubr.f32.mxu0 0.0
      %1530 = vmatmul.mubr.f32.gmra.mrb[0].mxu0 %v995
      %v1531 = vpop.f32.mrb[0].mxu0
      %v1532 = vadd.f32 %v910, %v1531
      %v1533 = vpop.f32.mrb[0].mxu0
      %v1534 = vadd.f32 %v912, %v1533
      %1535 = vdwg.mxu0
      %1536 = vmatprep.subr.mxu0 %v315
      %1537 = vmatpush1.msra.mxu0 %v314
      %1538 = vmatprep.subr.mxu0 %v331
      %1539 = vmatpush1.msra.mxu0 %v330
      %1540 = vmatprep.subr.mxu0 0.0
      %1541 = vmatpush1.msra.mxu0 0.0
      %1542 = vmatprep.subr.mxu0 0.0
      %1543 = vmatpush1.msra.mxu0 0.0
      %1544 = vmatprep.subr.mxu0 0.0
      %1545 = vmatpush1.msra.mxu0 0.0
      %1546 = vmatprep.subr.mxu0 0.0
      %1547 = vmatpush1.msra.mxu0 0.0
      %1548 = vmatprep.subr.mxu0 0.0
      %1549 = vmatpush1.msra.mxu0 0.0
      %1550 = vmatprep.subr.mxu0 0.0
      %1551 = vmatpush1.msra.mxu0 0.0
      %1552 = vmatprep.subr.mxu0 0.0
      %1553 = vmatpush1.msra.mxu0 0.0
      %1554 = vmatprep.subr.mxu0 0.0
      %1555 = vmatpush1.msra.mxu0 0.0
      %1556 = vmatprep.subr.mxu0 0.0
      %1557 = vmatpush1.msra.mxu0 0.0
      %1558 = vmatprep.subr.mxu0 0.0
      %1559 = vmatpush1.msra.mxu0 0.0
      %1560 = vmatprep.subr.mxu0 0.0
      %1561 = vmatpush1.msra.mxu0 0.0
      %1562 = vmatprep.subr.mxu0 0.0
      %1563 = vmatpush1.msra.mxu0 0.0
      %1564 = vmatprep.subr.mxu0 0.0
      %1565 = vmatpush1.msra.mxu0 0.0
      %1566 = vmatprep.subr.mxu0 0.0
      %1567 = vmatpush1.msra.mxu0 0.0
      %1568 = vmatprep.subr.mxu0 0.0
      %1569 = vmatpush1.msra.mxu0 0.0
      %1570 = vmatprep.subr.mxu0 0.0
      %1571 = vmatpush1.msra.mxu0 0.0
      %1572 = vmatprep.subr.mxu0 0.0
      %1573 = vmatpush1.msra.mxu0 0.0
      %1574 = vmatprep.subr.mxu0 0.0
      %1575 = vmatpush1.msra.mxu0 0.0
      %1576 = vmatprep.subr.mxu0 0.0
      %1577 = vmatpush1.msra.mxu0 0.0
      %1578 = vmatprep.subr.mxu0 0.0
      %1579 = vmatpush1.msra.mxu0 0.0
      %1580 = vmatprep.subr.mxu0 0.0
      %1581 = vmatpush1.msra.mxu0 0.0
      %1582 = vmatprep.subr.mxu0 0.0
      %1583 = vmatpush1.msra.mxu0 0.0
      %1584 = vmatprep.subr.mxu0 0.0
      %1585 = vmatpush1.msra.mxu0 0.0
      %1586 = vmatprep.subr.mxu0 0.0
      %1587 = vmatpush1.msra.mxu0 0.0
      %1588 = vmatprep.subr.mxu0 0.0
      %1589 = vmatpush1.msra.mxu0 0.0
      %1590 = vmatprep.subr.mxu0 0.0
      %1591 = vmatpush1.msra.mxu0 0.0
      %1592 = vmatprep.subr.mxu0 0.0
      %1593 = vmatpush1.msra.mxu0 0.0
      %1594 = vmatprep.subr.mxu0 0.0
      %1595 = vmatpush1.msra.mxu0 0.0
      %1596 = vmatprep.subr.mxu0 0.0
      %1597 = vmatpush1.msra.mxu0 0.0
      %1598 = vmatprep.subr.mxu0 0.0
      %1599 = vmatpush1.msra.mxu0 0.0
      %1600 = vmatprep.mubr.f32.mxu0 0.0
      %1601 = vmatmul.mubr.f32.gmra.mrb[0].mxu0 %v992
      %v1602 = vpop.f32.mrb[0].mxu0
      %v1603 = vadd.f32 %v981, %v1602
      %v1604 = vpop.f32.mrb[0].mxu0
      %v1605 = vadd.f32 %v983, %v1604
      %1606 = vmatprep.mubr.f32.mxu0 0.0
      %1607 = vmatmul.mubr.f32.gmra.mrb[0].mxu0 %v995
      %v1608 = vpop.f32.mrb[0].mxu0
      %v1609 = vadd.f32 %v987, %v1608
      %v1610 = vpop.f32.mrb[0].mxu0
      %v1611 = vadd.f32 %v989, %v1610
      %1612 = vdwg.mxu0
      %v1613 = vld [vmem:[%s4] sm:$0x1]
      %v1614 = vld [vmem:[%s5] sm:$0x1]
      %v1616 = vsel %vm368, %v1614, 0
      %1618 = vmatprep.subr.mxu0 %v333
      %1619 = vmatpush1.msra.mxu0 %v332
      %1620 = vmatprep.subr.mxu0 %v349
      %1621 = vmatpush1.msra.mxu0 %v348
      %1622 = vmatprep.subr.mxu0 0.0
      %1623 = vmatpush1.msra.mxu0 0.0
      %1624 = vmatprep.subr.mxu0 0.0
      %1625 = vmatpush1.msra.mxu0 0.0
      %1626 = vmatprep.subr.mxu0 0.0
      %1627 = vmatpush1.msra.mxu0 0.0
      %1628 = vmatprep.subr.mxu0 0.0
      %1629 = vmatpush1.msra.mxu0 0.0
      %1630 = vmatprep.subr.mxu0 0.0
      %1631 = vmatpush1.msra.mxu0 0.0
      %1632 = vmatprep.subr.mxu0 0.0
      %1633 = vmatpush1.msra.mxu0 0.0
      %1634 = vmatprep.subr.mxu0 0.0
      %1635 = vmatpush1.msra.mxu0 0.0
      %1636 = vmatprep.subr.mxu0 0.0
      %1637 = vmatpush1.msra.mxu0 0.0
      %1638 = vmatprep.subr.mxu0 0.0
      %1639 = vmatpush1.msra.mxu0 0.0
      %1640 = vmatprep.subr.mxu0 0.0
      %1641 = vmatpush1.msra.mxu0 0.0
      %1642 = vmatprep.subr.mxu0 0.0
      %1643 = vmatpush1.msra.mxu0 0.0
      %1644 = vmatprep.subr.mxu0 0.0
      %1645 = vmatpush1.msra.mxu0 0.0
      %1646 = vmatprep.subr.mxu0 0.0
      %1647 = vmatpush1.msra.mxu0 0.0
      %1648 = vmatprep.subr.mxu0 0.0
      %1649 = vmatpush1.msra.mxu0 0.0
      %1650 = vmatprep.subr.mxu0 0.0
      %1651 = vmatpush1.msra.mxu0 0.0
      %1652 = vmatprep.subr.mxu0 0.0
      %1653 = vmatpush1.msra.mxu0 0.0
      %1654 = vmatprep.subr.mxu0 0.0
      %1655 = vmatpush1.msra.mxu0 0.0
      %1656 = vmatprep.subr.mxu0 0.0
      %1657 = vmatpush1.msra.mxu0 0.0
      %1658 = vmatprep.subr.mxu0 0.0
      %1659 = vmatpush1.msra.mxu0 0.0
      %1660 = vmatprep.subr.mxu0 0.0
      %1661 = vmatpush1.msra.mxu0 0.0
      %1662 = vmatprep.subr.mxu0 0.0
      %1663 = vmatpush1.msra.mxu0 0.0
      %1664 = vmatprep.subr.mxu0 0.0
      %1665 = vmatpush1.msra.mxu0 0.0
      %1666 = vmatprep.subr.mxu0 0.0
      %1667 = vmatpush1.msra.mxu0 0.0
      %1668 = vmatprep.subr.mxu0 0.0
      %1669 = vmatpush1.msra.mxu0 0.0
      %1670 = vmatprep.subr.mxu0 0.0
      %1671 = vmatpush1.msra.mxu0 0.0
      %1672 = vmatprep.subr.mxu0 0.0
      %1673 = vmatpush1.msra.mxu0 0.0
      %1674 = vmatprep.subr.mxu0 0.0
      %1675 = vmatpush1.msra.mxu0 0.0
      %1676 = vmatprep.subr.mxu0 0.0
      %1677 = vmatpush1.msra.mxu0 0.0
      %1678 = vmatprep.subr.mxu0 0.0
      %1679 = vmatpush1.msra.mxu0 0.0
      %1680 = vmatprep.subr.mxu0 0.0
      %1681 = vmatpush1.msra.mxu0 0.0
      %1682 = vmatprep.mubr.f32.mxu0 0.0
      %1683 = vmatmul.mubr.f32.gmra.mrb[0].mxu0 %v1616
      %v1684 = vpop.f32.mrb[0].mxu0
      %v1685 = vadd.f32 0.0, %v1684
      %v1686 = vpop.f32.mrb[0].mxu0
      %v1687 = vadd.f32 0.0, %v1686
      %1688 = vdwg.mxu0
      %1689 = vmatprep.subr.mxu0 %v335
      %1690 = vmatpush1.msra.mxu0 %v334
      %1691 = vmatprep.subr.mxu0 %v351
      %1692 = vmatpush1.msra.mxu0 %v350
      %1693 = vmatprep.subr.mxu0 0.0
      %1694 = vmatpush1.msra.mxu0 0.0
      %1695 = vmatprep.subr.mxu0 0.0
      %1696 = vmatpush1.msra.mxu0 0.0
      %1697 = vmatprep.subr.mxu0 0.0
      %1698 = vmatpush1.msra.mxu0 0.0
      %1699 = vmatprep.subr.mxu0 0.0
      %1700 = vmatpush1.msra.mxu0 0.0
      %1701 = vmatprep.subr.mxu0 0.0
      %1702 = vmatpush1.msra.mxu0 0.0
      %1703 = vmatprep.subr.mxu0 0.0
      %1704 = vmatpush1.msra.mxu0 0.0
      %1705 = vmatprep.subr.mxu0 0.0
      %1706 = vmatpush1.msra.mxu0 0.0
      %1707 = vmatprep.subr.mxu0 0.0
      %1708 = vmatpush1.msra.mxu0 0.0
      %1709 = vmatprep.subr.mxu0 0.0
      %1710 = vmatpush1.msra.mxu0 0.0
      %1711 = vmatprep.subr.mxu0 0.0
      %1712 = vmatpush1.msra.mxu0 0.0
      %1713 = vmatprep.subr.mxu0 0.0
      %1714 = vmatpush1.msra.mxu0 0.0
      %1715 = vmatprep.subr.mxu0 0.0
      %1716 = vmatpush1.msra.mxu0 0.0
      %1717 = vmatprep.subr.mxu0 0.0
      %1718 = vmatpush1.msra.mxu0 0.0
      %1719 = vmatprep.subr.mxu0 0.0
      %1720 = vmatpush1.msra.mxu0 0.0
      %1721 = vmatprep.subr.mxu0 0.0
      %1722 = vmatpush1.msra.mxu0 0.0
      %1723 = vmatprep.subr.mxu0 0.0
      %1724 = vmatpush1.msra.mxu0 0.0
      %1725 = vmatprep.subr.mxu0 0.0
      %1726 = vmatpush1.msra.mxu0 0.0
      %1727 = vmatprep.subr.mxu0 0.0
      %1728 = vmatpush1.msra.mxu0 0.0
      %1729 = vmatprep.subr.mxu0 0.0
      %1730 = vmatpush1.msra.mxu0 0.0
      %1731 = vmatprep.subr.mxu0 0.0
      %1732 = vmatpush1.msra.mxu0 0.0
      %1733 = vmatprep.subr.mxu0 0.0
      %1734 = vmatpush1.msra.mxu0 0.0
      %1735 = vmatprep.subr.mxu0 0.0
      %1736 = vmatpush1.msra.mxu0 0.0
      %1737 = vmatprep.subr.mxu0 0.0
      %1738 = vmatpush1.msra.mxu0 0.0
      %1739 = vmatprep.subr.mxu0 0.0
      %1740 = vmatpush1.msra.mxu0 0.0
      %1741 = vmatprep.subr.mxu0 0.0
      %1742 = vmatpush1.msra.mxu0 0.0
      %1743 = vmatprep.subr.mxu0 0.0
      %1744 = vmatpush1.msra.mxu0 0.0
      %1745 = vmatprep.subr.mxu0 0.0
      %1746 = vmatpush1.msra.mxu0 0.0
      %1747 = vmatprep.subr.mxu0 0.0
      %1748 = vmatpush1.msra.mxu0 0.0
      %1749 = vmatprep.subr.mxu0 0.0
      %1750 = vmatpush1.msra.mxu0 0.0
      %1751 = vmatprep.subr.mxu0 0.0
      %1752 = vmatpush1.msra.mxu0 0.0
      %1753 = vmatprep.mubr.f32.mxu0 0.0
      %1754 = vmatmul.mubr.f32.gmra.mrb[0].mxu0 %v1616
      %v1755 = vpop.f32.mrb[0].mxu0
      %v1756 = vadd.f32 0.0, %v1755
      %v1757 = vpop.f32.mrb[0].mxu0
      %v1758 = vadd.f32 0.0, %v1757
      %1759 = vdwg.mxu0
      %1760 = vmatprep.subr.mxu0 %v337
      %1761 = vmatpush1.msra.mxu0 %v336
      %1762 = vmatprep.subr.mxu0 %v353
      %1763 = vmatpush1.msra.mxu0 %v352
      %1764 = vmatprep.subr.mxu0 0.0
      %1765 = vmatpush1.msra.mxu0 0.0
      %1766 = vmatprep.subr.mxu0 0.0
      %1767 = vmatpush1.msra.mxu0 0.0
      %1768 = vmatprep.subr.mxu0 0.0
      %1769 = vmatpush1.msra.mxu0 0.0
      %1770 = vmatprep.subr.mxu0 0.0
      %1771 = vmatpush1.msra.mxu0 0.0
      %1772 = vmatprep.subr.mxu0 0.0
      %1773 = vmatpush1.msra.mxu0 0.0
      %1774 = vmatprep.subr.mxu0 0.0
      %1775 = vmatpush1.msra.mxu0 0.0
      %1776 = vmatprep.subr.mxu0 0.0
      %1777 = vmatpush1.msra.mxu0 0.0
      %1778 = vmatprep.subr.mxu0 0.0
      %1779 = vmatpush1.msra.mxu0 0.0
      %1780 = vmatprep.subr.mxu0 0.0
      %1781 = vmatpush1.msra.mxu0 0.0
      %1782 = vmatprep.subr.mxu0 0.0
      %1783 = vmatpush1.msra.mxu0 0.0
      %1784 = vmatprep.subr.mxu0 0.0
      %1785 = vmatpush1.msra.mxu0 0.0
      %1786 = vmatprep.subr.mxu0 0.0
      %1787 = vmatpush1.msra.mxu0 0.0
      %1788 = vmatprep.subr.mxu0 0.0
      %1789 = vmatpush1.msra.mxu0 0.0
      %1790 = vmatprep.subr.mxu0 0.0
      %1791 = vmatpush1.msra.mxu0 0.0
      %1792 = vmatprep.subr.mxu0 0.0
      %1793 = vmatpush1.msra.mxu0 0.0
      %1794 = vmatprep.subr.mxu0 0.0
      %1795 = vmatpush1.msra.mxu0 0.0
      %1796 = vmatprep.subr.mxu0 0.0
      %1797 = vmatpush1.msra.mxu0 0.0
      %1798 = vmatprep.subr.mxu0 0.0
      %1799 = vmatpush1.msra.mxu0 0.0
      %1800 = vmatprep.subr.mxu0 0.0
      %1801 = vmatpush1.msra.mxu0 0.0
      %1802 = vmatprep.subr.mxu0 0.0
      %1803 = vmatpush1.msra.mxu0 0.0
      %1804 = vmatprep.subr.mxu0 0.0
      %1805 = vmatpush1.msra.mxu0 0.0
      %1806 = vmatprep.subr.mxu0 0.0
      %1807 = vmatpush1.msra.mxu0 0.0
      %1808 = vmatprep.subr.mxu0 0.0
      %1809 = vmatpush1.msra.mxu0 0.0
      %1810 = vmatprep.subr.mxu0 0.0
      %1811 = vmatpush1.msra.mxu0 0.0
      %1812 = vmatprep.subr.mxu0 0.0
      %1813 = vmatpush1.msra.mxu0 0.0
      %1814 = vmatprep.subr.mxu0 0.0
      %1815 = vmatpush1.msra.mxu0 0.0
      %1816 = vmatprep.subr.mxu0 0.0
      %1817 = vmatpush1.msra.mxu0 0.0
      %1818 = vmatprep.subr.mxu0 0.0
      %1819 = vmatpush1.msra.mxu0 0.0
      %1820 = vmatprep.subr.mxu0 0.0
      %1821 = vmatpush1.msra.mxu0 0.0
      %1822 = vmatprep.subr.mxu0 0.0
      %1823 = vmatpush1.msra.mxu0 0.0
      %1824 = vmatprep.mubr.f32.mxu0 0.0
      %1825 = vmatmul.mubr.f32.gmra.mrb[0].mxu0 %v1616
      %v1826 = vpop.f32.mrb[0].mxu0
      %v1827 = vadd.f32 0.0, %v1826
      %v1828 = vpop.f32.mrb[0].mxu0
      %v1829 = vadd.f32 0.0, %v1828
      %1830 = vdwg.mxu0
      %1831 = vmatprep.subr.mxu0 %v339
      %1832 = vmatpush1.msra.mxu0 %v338
      %1833 = vmatprep.subr.mxu0 %v355
      %1834 = vmatpush1.msra.mxu0 %v354
      %1835 = vmatprep.subr.mxu0 0.0
      %1836 = vmatpush1.msra.mxu0 0.0
      %1837 = vmatprep.subr.mxu0 0.0
      %1838 = vmatpush1.msra.mxu0 0.0
      %1839 = vmatprep.subr.mxu0 0.0
      %1840 = vmatpush1.msra.mxu0 0.0
      %1841 = vmatprep.subr.mxu0 0.0
      %1842 = vmatpush1.msra.mxu0 0.0
      %1843 = vmatprep.subr.mxu0 0.0
      %1844 = vmatpush1.msra.mxu0 0.0
      %1845 = vmatprep.subr.mxu0 0.0
      %1846 = vmatpush1.msra.mxu0 0.0
      %1847 = vmatprep.subr.mxu0 0.0
      %1848 = vmatpush1.msra.mxu0 0.0
      %1849 = vmatprep.subr.mxu0 0.0
      %1850 = vmatpush1.msra.mxu0 0.0
      %1851 = vmatprep.subr.mxu0 0.0
      %1852 = vmatpush1.msra.mxu0 0.0
      %1853 = vmatprep.subr.mxu0 0.0
      %1854 = vmatpush1.msra.mxu0 0.0
      %1855 = vmatprep.subr.mxu0 0.0
      %1856 = vmatpush1.msra.mxu0 0.0
      %1857 = vmatprep.subr.mxu0 0.0
      %1858 = vmatpush1.msra.mxu0 0.0
      %1859 = vmatprep.subr.mxu0 0.0
      %1860 = vmatpush1.msra.mxu0 0.0
      %1861 = vmatprep.subr.mxu0 0.0
      %1862 = vmatpush1.msra.mxu0 0.0
      %1863 = vmatprep.subr.mxu0 0.0
      %1864 = vmatpush1.msra.mxu0 0.0
      %1865 = vmatprep.subr.mxu0 0.0
      %1866 = vmatpush1.msra.mxu0 0.0
      %1867 = vmatprep.subr.mxu0 0.0
      %1868 = vmatpush1.msra.mxu0 0.0
      %1869 = vmatprep.subr.mxu0 0.0
      %1870 = vmatpush1.msra.mxu0 0.0
      %1871 = vmatprep.subr.mxu0 0.0
      %1872 = vmatpush1.msra.mxu0 0.0
      %1873 = vmatprep.subr.mxu0 0.0
      %1874 = vmatpush1.msra.mxu0 0.0
      %1875 = vmatprep.subr.mxu0 0.0
      %1876 = vmatpush1.msra.mxu0 0.0
      %1877 = vmatprep.subr.mxu0 0.0
      %1878 = vmatpush1.msra.mxu0 0.0
      %1879 = vmatprep.subr.mxu0 0.0
      %1880 = vmatpush1.msra.mxu0 0.0
      %1881 = vmatprep.subr.mxu0 0.0
      %1882 = vmatpush1.msra.mxu0 0.0
      %1883 = vmatprep.subr.mxu0 0.0
      %1884 = vmatpush1.msra.mxu0 0.0
      %1885 = vmatprep.subr.mxu0 0.0
      %1886 = vmatpush1.msra.mxu0 0.0
      %1887 = vmatprep.subr.mxu0 0.0
      %1888 = vmatpush1.msra.mxu0 0.0
      %1889 = vmatprep.subr.mxu0 0.0
      %1890 = vmatpush1.msra.mxu0 0.0
      %1891 = vmatprep.subr.mxu0 0.0
      %1892 = vmatpush1.msra.mxu0 0.0
      %1893 = vmatprep.subr.mxu0 0.0
      %1894 = vmatpush1.msra.mxu0 0.0
      %1895 = vmatprep.mubr.f32.mxu0 0.0
      %1896 = vmatmul.mubr.f32.gmra.mrb[0].mxu0 %v1616
      %v1897 = vpop.f32.mrb[0].mxu0
      %v1898 = vadd.f32 0.0, %v1897
      %v1899 = vpop.f32.mrb[0].mxu0
      %v1900 = vadd.f32 0.0, %v1899
      %1901 = vdwg.mxu0
      %1902 = vmatprep.subr.mxu0 %v341
      %1903 = vmatpush1.msra.mxu0 %v340
      %1904 = vmatprep.subr.mxu0 %v357
      %1905 = vmatpush1.msra.mxu0 %v356
      %1906 = vmatprep.subr.mxu0 0.0
      %1907 = vmatpush1.msra.mxu0 0.0
      %1908 = vmatprep.subr.mxu0 0.0
      %1909 = vmatpush1.msra.mxu0 0.0
      %1910 = vmatprep.subr.mxu0 0.0
      %1911 = vmatpush1.msra.mxu0 0.0
      %1912 = vmatprep.subr.mxu0 0.0
      %1913 = vmatpush1.msra.mxu0 0.0
      %1914 = vmatprep.subr.mxu0 0.0
      %1915 = vmatpush1.msra.mxu0 0.0
      %1916 = vmatprep.subr.mxu0 0.0
      %1917 = vmatpush1.msra.mxu0 0.0
      %1918 = vmatprep.subr.mxu0 0.0
      %1919 = vmatpush1.msra.mxu0 0.0
      %1920 = vmatprep.subr.mxu0 0.0
      %1921 = vmatpush1.msra.mxu0 0.0
      %1922 = vmatprep.subr.mxu0 0.0
      %1923 = vmatpush1.msra.mxu0 0.0
      %1924 = vmatprep.subr.mxu0 0.0
      %1925 = vmatpush1.msra.mxu0 0.0
      %1926 = vmatprep.subr.mxu0 0.0
      %1927 = vmatpush1.msra.mxu0 0.0
      %1928 = vmatprep.subr.mxu0 0.0
      %1929 = vmatpush1.msra.mxu0 0.0
      %1930 = vmatprep.subr.mxu0 0.0
      %1931 = vmatpush1.msra.mxu0 0.0
      %1932 = vmatprep.subr.mxu0 0.0
      %1933 = vmatpush1.msra.mxu0 0.0
      %1934 = vmatprep.subr.mxu0 0.0
      %1935 = vmatpush1.msra.mxu0 0.0
      %1936 = vmatprep.subr.mxu0 0.0
      %1937 = vmatpush1.msra.mxu0 0.0
      %1938 = vmatprep.subr.mxu0 0.0
      %1939 = vmatpush1.msra.mxu0 0.0
      %1940 = vmatprep.subr.mxu0 0.0
      %1941 = vmatpush1.msra.mxu0 0.0
      %1942 = vmatprep.subr.mxu0 0.0
      %1943 = vmatpush1.msra.mxu0 0.0
      %1944 = vmatprep.subr.mxu0 0.0
      %1945 = vmatpush1.msra.mxu0 0.0
      %1946 = vmatprep.subr.mxu0 0.0
      %1947 = vmatpush1.msra.mxu0 0.0
      %1948 = vmatprep.subr.mxu0 0.0
      %1949 = vmatpush1.msra.mxu0 0.0
      %1950 = vmatprep.subr.mxu0 0.0
      %1951 = vmatpush1.msra.mxu0 0.0
      %1952 = vmatprep.subr.mxu0 0.0
      %1953 = vmatpush1.msra.mxu0 0.0
      %1954 = vmatprep.subr.mxu0 0.0
      %1955 = vmatpush1.msra.mxu0 0.0
      %1956 = vmatprep.subr.mxu0 0.0
      %1957 = vmatpush1.msra.mxu0 0.0
      %1958 = vmatprep.subr.mxu0 0.0
      %1959 = vmatpush1.msra.mxu0 0.0
      %1960 = vmatprep.subr.mxu0 0.0
      %1961 = vmatpush1.msra.mxu0 0.0
      %1962 = vmatprep.subr.mxu0 0.0
      %1963 = vmatpush1.msra.mxu0 0.0
      %1964 = vmatprep.subr.mxu0 0.0
      %1965 = vmatpush1.msra.mxu0 0.0
      %1966 = vmatprep.mubr.f32.mxu0 0.0
      %1967 = vmatmul.mubr.f32.gmra.mrb[0].mxu0 %v1616
      %v1968 = vpop.f32.mrb[0].mxu0
      %v1969 = vadd.f32 0.0, %v1968
      %v1970 = vpop.f32.mrb[0].mxu0
      %v1971 = vadd.f32 0.0, %v1970
      %1972 = vdwg.mxu0
      %1973 = vmatprep.subr.mxu0 %v343
      %1974 = vmatpush1.msra.mxu0 %v342
      %1975 = vmatprep.subr.mxu0 %v359
      %1976 = vmatpush1.msra.mxu0 %v358
      %1977 = vmatprep.subr.mxu0 0.0
      %1978 = vmatpush1.msra.mxu0 0.0
      %1979 = vmatprep.subr.mxu0 0.0
      %1980 = vmatpush1.msra.mxu0 0.0
      %1981 = vmatprep.subr.mxu0 0.0
      %1982 = vmatpush1.msra.mxu0 0.0
      %1983 = vmatprep.subr.mxu0 0.0
      %1984 = vmatpush1.msra.mxu0 0.0
      %1985 = vmatprep.subr.mxu0 0.0
      %1986 = vmatpush1.msra.mxu0 0.0
      %1987 = vmatprep.subr.mxu0 0.0
      %1988 = vmatpush1.msra.mxu0 0.0
      %1989 = vmatprep.subr.mxu0 0.0
      %1990 = vmatpush1.msra.mxu0 0.0
      %1991 = vmatprep.subr.mxu0 0.0
      %1992 = vmatpush1.msra.mxu0 0.0
      %1993 = vmatprep.subr.mxu0 0.0
      %1994 = vmatpush1.msra.mxu0 0.0
      %1995 = vmatprep.subr.mxu0 0.0
      %1996 = vmatpush1.msra.mxu0 0.0
      %1997 = vmatprep.subr.mxu0 0.0
      %1998 = vmatpush1.msra.mxu0 0.0
      %1999 = vmatprep.subr.mxu0 0.0
      %2000 = vmatpush1.msra.mxu0 0.0
      %2001 = vmatprep.subr.mxu0 0.0
      %2002 = vmatpush1.msra.mxu0 0.0
      %2003 = vmatprep.subr.mxu0 0.0
      %2004 = vmatpush1.msra.mxu0 0.0
      %2005 = vmatprep.subr.mxu0 0.0
      %2006 = vmatpush1.msra.mxu0 0.0
      %2007 = vmatprep.subr.mxu0 0.0
      %2008 = vmatpush1.msra.mxu0 0.0
      %2009 = vmatprep.subr.mxu0 0.0
      %2010 = vmatpush1.msra.mxu0 0.0
      %2011 = vmatprep.subr.mxu0 0.0
      %2012 = vmatpush1.msra.mxu0 0.0
      %2013 = vmatprep.subr.mxu0 0.0
      %2014 = vmatpush1.msra.mxu0 0.0
      %2015 = vmatprep.subr.mxu0 0.0
      %2016 = vmatpush1.msra.mxu0 0.0
      %2017 = vmatprep.subr.mxu0 0.0
      %2018 = vmatpush1.msra.mxu0 0.0
      %2019 = vmatprep.subr.mxu0 0.0
      %2020 = vmatpush1.msra.mxu0 0.0
      %2021 = vmatprep.subr.mxu0 0.0
      %2022 = vmatpush1.msra.mxu0 0.0
      %2023 = vmatprep.subr.mxu0 0.0
      %2024 = vmatpush1.msra.mxu0 0.0
      %2025 = vmatprep.subr.mxu0 0.0
      %2026 = vmatpush1.msra.mxu0 0.0
      %2027 = vmatprep.subr.mxu0 0.0
      %2028 = vmatpush1.msra.mxu0 0.0
      %2029 = vmatprep.subr.mxu0 0.0
      %2030 = vmatpush1.msra.mxu0 0.0
      %2031 = vmatprep.subr.mxu0 0.0
      %2032 = vmatpush1.msra.mxu0 0.0
      %2033 = vmatprep.subr.mxu0 0.0
      %2034 = vmatpush1.msra.mxu0 0.0
      %2035 = vmatprep.subr.mxu0 0.0
      %2036 = vmatpush1.msra.mxu0 0.0
      %2037 = vmatprep.mubr.f32.mxu0 0.0
      %2038 = vmatmul.mubr.f32.gmra.mrb[0].mxu0 %v1616
      %v2039 = vpop.f32.mrb[0].mxu0
      %v2040 = vadd.f32 0.0, %v2039
      %v2041 = vpop.f32.mrb[0].mxu0
      %v2042 = vadd.f32 0.0, %v2041
      %2043 = vdwg.mxu0
      %2044 = vmatprep.subr.mxu0 %v345
      %2045 = vmatpush1.msra.mxu0 %v344
      %2046 = vmatprep.subr.mxu0 %v361
      %2047 = vmatpush1.msra.mxu0 %v360
      %2048 = vmatprep.subr.mxu0 0.0
      %2049 = vmatpush1.msra.mxu0 0.0
      %2050 = vmatprep.subr.mxu0 0.0
      %2051 = vmatpush1.msra.mxu0 0.0
      %2052 = vmatprep.subr.mxu0 0.0
      %2053 = vmatpush1.msra.mxu0 0.0
      %2054 = vmatprep.subr.mxu0 0.0
      %2055 = vmatpush1.msra.mxu0 0.0
      %2056 = vmatprep.subr.mxu0 0.0
      %2057 = vmatpush1.msra.mxu0 0.0
      %2058 = vmatprep.subr.mxu0 0.0
      %2059 = vmatpush1.msra.mxu0 0.0
      %2060 = vmatprep.subr.mxu0 0.0
      %2061 = vmatpush1.msra.mxu0 0.0
      %2062 = vmatprep.subr.mxu0 0.0
      %2063 = vmatpush1.msra.mxu0 0.0
      %2064 = vmatprep.subr.mxu0 0.0
      %2065 = vmatpush1.msra.mxu0 0.0
      %2066 = vmatprep.subr.mxu0 0.0
      %2067 = vmatpush1.msra.mxu0 0.0
      %2068 = vmatprep.subr.mxu0 0.0
      %2069 = vmatpush1.msra.mxu0 0.0
      %2070 = vmatprep.subr.mxu0 0.0
      %2071 = vmatpush1.msra.mxu0 0.0
      %2072 = vmatprep.subr.mxu0 0.0
      %2073 = vmatpush1.msra.mxu0 0.0
      %2074 = vmatprep.subr.mxu0 0.0
      %2075 = vmatpush1.msra.mxu0 0.0
      %2076 = vmatprep.subr.mxu0 0.0
      %2077 = vmatpush1.msra.mxu0 0.0
      %2078 = vmatprep.subr.mxu0 0.0
      %2079 = vmatpush1.msra.mxu0 0.0
      %2080 = vmatprep.subr.mxu0 0.0
      %2081 = vmatpush1.msra.mxu0 0.0
      %2082 = vmatprep.subr.mxu0 0.0
      %2083 = vmatpush1.msra.mxu0 0.0
      %2084 = vmatprep.subr.mxu0 0.0
      %2085 = vmatpush1.msra.mxu0 0.0
      %2086 = vmatprep.subr.mxu0 0.0
      %2087 = vmatpush1.msra.mxu0 0.0
      %2088 = vmatprep.subr.mxu0 0.0
      %2089 = vmatpush1.msra.mxu0 0.0
      %2090 = vmatprep.subr.mxu0 0.0
      %2091 = vmatpush1.msra.mxu0 0.0
      %2092 = vmatprep.subr.mxu0 0.0
      %2093 = vmatpush1.msra.mxu0 0.0
      %2094 = vmatprep.subr.mxu0 0.0
      %2095 = vmatpush1.msra.mxu0 0.0
      %2096 = vmatprep.subr.mxu0 0.0
      %2097 = vmatpush1.msra.mxu0 0.0
      %2098 = vmatprep.subr.mxu0 0.0
      %2099 = vmatpush1.msra.mxu0 0.0
      %2100 = vmatprep.subr.mxu0 0.0
      %2101 = vmatpush1.msra.mxu0 0.0
      %2102 = vmatprep.subr.mxu0 0.0
      %2103 = vmatpush1.msra.mxu0 0.0
      %2104 = vmatprep.subr.mxu0 0.0
      %2105 = vmatpush1.msra.mxu0 0.0
      %2106 = vmatprep.subr.mxu0 0.0
      %2107 = vmatpush1.msra.mxu0 0.0
      %2108 = vmatprep.mubr.f32.mxu0 0.0
      %2109 = vmatmul.mubr.f32.gmra.mrb[0].mxu0 %v1616
      %v2110 = vpop.f32.mrb[0].mxu0
      %v2111 = vadd.f32 0.0, %v2110
      %v2112 = vpop.f32.mrb[0].mxu0
      %v2113 = vadd.f32 0.0, %v2112
      %2114 = vdwg.mxu0
      %2115 = vmatprep.subr.mxu0 %v347
      %2116 = vmatpush1.msra.mxu0 %v346
      %2117 = vmatprep.subr.mxu0 %v363
      %2118 = vmatpush1.msra.mxu0 %v362
      %2119 = vmatprep.subr.mxu0 0.0
      %2120 = vmatpush1.msra.mxu0 0.0
      %2121 = vmatprep.subr.mxu0 0.0
      %2122 = vmatpush1.msra.mxu0 0.0
      %2123 = vmatprep.subr.mxu0 0.0
      %2124 = vmatpush1.msra.mxu0 0.0
      %2125 = vmatprep.subr.mxu0 0.0
      %2126 = vmatpush1.msra.mxu0 0.0
      %2127 = vmatprep.subr.mxu0 0.0
      %2128 = vmatpush1.msra.mxu0 0.0
      %2129 = vmatprep.subr.mxu0 0.0
      %2130 = vmatpush1.msra.mxu0 0.0
      %2131 = vmatprep.subr.mxu0 0.0
      %2132 = vmatpush1.msra.mxu0 0.0
      %2133 = vmatprep.subr.mxu0 0.0
      %2134 = vmatpush1.msra.mxu0 0.0
      %2135 = vmatprep.subr.mxu0 0.0
      %2136 = vmatpush1.msra.mxu0 0.0
      %2137 = vmatprep.subr.mxu0 0.0
      %2138 = vmatpush1.msra.mxu0 0.0
      %2139 = vmatprep.subr.mxu0 0.0
      %2140 = vmatpush1.msra.mxu0 0.0
      %2141 = vmatprep.subr.mxu0 0.0
      %2142 = vmatpush1.msra.mxu0 0.0
      %2143 = vmatprep.subr.mxu0 0.0
      %2144 = vmatpush1.msra.mxu0 0.0
      %2145 = vmatprep.subr.mxu0 0.0
      %2146 = vmatpush1.msra.mxu0 0.0
      %2147 = vmatprep.subr.mxu0 0.0
      %2148 = vmatpush1.msra.mxu0 0.0
      %2149 = vmatprep.subr.mxu0 0.0
      %2150 = vmatpush1.msra.mxu0 0.0
      %2151 = vmatprep.subr.mxu0 0.0
      %2152 = vmatpush1.msra.mxu0 0.0
      %2153 = vmatprep.subr.mxu0 0.0
      %2154 = vmatpush1.msra.mxu0 0.0
      %2155 = vmatprep.subr.mxu0 0.0
      %2156 = vmatpush1.msra.mxu0 0.0
      %2157 = vmatprep.subr.mxu0 0.0
      %2158 = vmatpush1.msra.mxu0 0.0
      %2159 = vmatprep.subr.mxu0 0.0
      %2160 = vmatpush1.msra.mxu0 0.0
      %2161 = vmatprep.subr.mxu0 0.0
      %2162 = vmatpush1.msra.mxu0 0.0
      %2163 = vmatprep.subr.mxu0 0.0
      %2164 = vmatpush1.msra.mxu0 0.0
      %2165 = vmatprep.subr.mxu0 0.0
      %2166 = vmatpush1.msra.mxu0 0.0
      %2167 = vmatprep.subr.mxu0 0.0
      %2168 = vmatpush1.msra.mxu0 0.0
      %2169 = vmatprep.subr.mxu0 0.0
      %2170 = vmatpush1.msra.mxu0 0.0
      %2171 = vmatprep.subr.mxu0 0.0
      %2172 = vmatpush1.msra.mxu0 0.0
      %2173 = vmatprep.subr.mxu0 0.0
      %2174 = vmatpush1.msra.mxu0 0.0
      %2175 = vmatprep.subr.mxu0 0.0
      %2176 = vmatpush1.msra.mxu0 0.0
      %2177 = vmatprep.subr.mxu0 0.0
      %2178 = vmatpush1.msra.mxu0 0.0
      %2179 = vmatprep.mubr.f32.mxu0 0.0
      %2180 = vmatmul.mubr.f32.gmra.mrb[0].mxu0 %v1616
      %v2181 = vpop.f32.mrb[0].mxu0
      %v2182 = vadd.f32 0.0, %v2181
      %v2183 = vpop.f32.mrb[0].mxu0
      %v2184 = vadd.f32 0.0, %v2183
      %2185 = vdwg.mxu0
      %v2187 = vsel %vm368, %v1613, 0
      %2189 = vmatprep.subr.mxu0 %v301
      %2190 = vmatpush1.msra.mxu0 %v300
      %2191 = vmatprep.subr.mxu0 %v317
      %2192 = vmatpush1.msra.mxu0 %v316
      %2193 = vmatprep.subr.mxu0 0.0
      %2194 = vmatpush1.msra.mxu0 0.0
      %2195 = vmatprep.subr.mxu0 0.0
      %2196 = vmatpush1.msra.mxu0 0.0
      %2197 = vmatprep.subr.mxu0 0.0
      %2198 = vmatpush1.msra.mxu0 0.0
      %2199 = vmatprep.subr.mxu0 0.0
      %2200 = vmatpush1.msra.mxu0 0.0
      %2201 = vmatprep.subr.mxu0 0.0
      %2202 = vmatpush1.msra.mxu0 0.0
      %2203 = vmatprep.subr.mxu0 0.0
      %2204 = vmatpush1.msra.mxu0 0.0
      %2205 = vmatprep.subr.mxu0 0.0
      %2206 = vmatpush1.msra.mxu0 0.0
      %2207 = vmatprep.subr.mxu0 0.0
      %2208 = vmatpush1.msra.mxu0 0.0
      %2209 = vmatprep.subr.mxu0 0.0
      %2210 = vmatpush1.msra.mxu0 0.0
      %2211 = vmatprep.subr.mxu0 0.0
      %2212 = vmatpush1.msra.mxu0 0.0
      %2213 = vmatprep.subr.mxu0 0.0
      %2214 = vmatpush1.msra.mxu0 0.0
      %2215 = vmatprep.subr.mxu0 0.0
      %2216 = vmatpush1.msra.mxu0 0.0
      %2217 = vmatprep.subr.mxu0 0.0
      %2218 = vmatpush1.msra.mxu0 0.0
      %2219 = vmatprep.subr.mxu0 0.0
      %2220 = vmatpush1.msra.mxu0 0.0
      %2221 = vmatprep.subr.mxu0 0.0
      %2222 = vmatpush1.msra.mxu0 0.0
      %2223 = vmatprep.subr.mxu0 0.0
      %2224 = vmatpush1.msra.mxu0 0.0
      %2225 = vmatprep.subr.mxu0 0.0
      %2226 = vmatpush1.msra.mxu0 0.0
      %2227 = vmatprep.subr.mxu0 0.0
      %2228 = vmatpush1.msra.mxu0 0.0
      %2229 = vmatprep.subr.mxu0 0.0
      %2230 = vmatpush1.msra.mxu0 0.0
      %2231 = vmatprep.subr.mxu0 0.0
      %2232 = vmatpush1.msra.mxu0 0.0
      %2233 = vmatprep.subr.mxu0 0.0
      %2234 = vmatpush1.msra.mxu0 0.0
      %2235 = vmatprep.subr.mxu0 0.0
      %2236 = vmatpush1.msra.mxu0 0.0
      %2237 = vmatprep.subr.mxu0 0.0
      %2238 = vmatpush1.msra.mxu0 0.0
      %2239 = vmatprep.subr.mxu0 0.0
      %2240 = vmatpush1.msra.mxu0 0.0
      %2241 = vmatprep.subr.mxu0 0.0
      %2242 = vmatpush1.msra.mxu0 0.0
      %2243 = vmatprep.subr.mxu0 0.0
      %2244 = vmatpush1.msra.mxu0 0.0
      %2245 = vmatprep.subr.mxu0 0.0
      %2246 = vmatpush1.msra.mxu0 0.0
      %2247 = vmatprep.subr.mxu0 0.0
      %2248 = vmatpush1.msra.mxu0 0.0
      %2249 = vmatprep.subr.mxu0 0.0
      %2250 = vmatpush1.msra.mxu0 0.0
      %2251 = vmatprep.subr.mxu0 0.0
      %2252 = vmatpush1.msra.mxu0 0.0
      %2253 = vmatprep.mubr.f32.mxu0 0.0
      %2254 = vmatmul.mubr.f32.gmra.mrb[0].mxu0 %v2187
      %v2255 = vpop.f32.mrb[0].mxu0
      %v2256 = vadd.f32 %v1685, %v2255
      %v2257 = vpop.f32.mrb[0].mxu0
      %v2258 = vadd.f32 %v1687, %v2257
      %2259 = vdwg.mxu0
      %2260 = vmatprep.subr.mxu0 %v303
      %2261 = vmatpush1.msra.mxu0 %v302
      %2262 = vmatprep.subr.mxu0 %v319
      %2263 = vmatpush1.msra.mxu0 %v318
      %2264 = vmatprep.subr.mxu0 0.0
      %2265 = vmatpush1.msra.mxu0 0.0
      %2266 = vmatprep.subr.mxu0 0.0
      %2267 = vmatpush1.msra.mxu0 0.0
      %2268 = vmatprep.subr.mxu0 0.0
      %2269 = vmatpush1.msra.mxu0 0.0
      %2270 = vmatprep.subr.mxu0 0.0
      %2271 = vmatpush1.msra.mxu0 0.0
      %2272 = vmatprep.subr.mxu0 0.0
      %2273 = vmatpush1.msra.mxu0 0.0
      %2274 = vmatprep.subr.mxu0 0.0
      %2275 = vmatpush1.msra.mxu0 0.0
      %2276 = vmatprep.subr.mxu0 0.0
      %2277 = vmatpush1.msra.mxu0 0.0
      %2278 = vmatprep.subr.mxu0 0.0
      %2279 = vmatpush1.msra.mxu0 0.0
      %2280 = vmatprep.subr.mxu0 0.0
      %2281 = vmatpush1.msra.mxu0 0.0
      %2282 = vmatprep.subr.mxu0 0.0
      %2283 = vmatpush1.msra.mxu0 0.0
      %2284 = vmatprep.subr.mxu0 0.0
      %2285 = vmatpush1.msra.mxu0 0.0
      %2286 = vmatprep.subr.mxu0 0.0
      %2287 = vmatpush1.msra.mxu0 0.0
      %2288 = vmatprep.subr.mxu0 0.0
      %2289 = vmatpush1.msra.mxu0 0.0
      %2290 = vmatprep.subr.mxu0 0.0
      %2291 = vmatpush1.msra.mxu0 0.0
      %2292 = vmatprep.subr.mxu0 0.0
      %2293 = vmatpush1.msra.mxu0 0.0
      %2294 = vmatprep.subr.mxu0 0.0
      %2295 = vmatpush1.msra.mxu0 0.0
      %2296 = vmatprep.subr.mxu0 0.0
      %2297 = vmatpush1.msra.mxu0 0.0
      %2298 = vmatprep.subr.mxu0 0.0
      %2299 = vmatpush1.msra.mxu0 0.0
      %2300 = vmatprep.subr.mxu0 0.0
      %2301 = vmatpush1.msra.mxu0 0.0
      %2302 = vmatprep.subr.mxu0 0.0
      %2303 = vmatpush1.msra.mxu0 0.0
      %2304 = vmatprep.subr.mxu0 0.0
      %2305 = vmatpush1.msra.mxu0 0.0
      %2306 = vmatprep.subr.mxu0 0.0
      %2307 = vmatpush1.msra.mxu0 0.0
      %2308 = vmatprep.subr.mxu0 0.0
      %2309 = vmatpush1.msra.mxu0 0.0
      %2310 = vmatprep.subr.mxu0 0.0
      %2311 = vmatpush1.msra.mxu0 0.0
      %2312 = vmatprep.subr.mxu0 0.0
      %2313 = vmatpush1.msra.mxu0 0.0
      %2314 = vmatprep.subr.mxu0 0.0
      %2315 = vmatpush1.msra.mxu0 0.0
      %2316 = vmatprep.subr.mxu0 0.0
      %2317 = vmatpush1.msra.mxu0 0.0
      %2318 = vmatprep.subr.mxu0 0.0
      %2319 = vmatpush1.msra.mxu0 0.0
      %2320 = vmatprep.subr.mxu0 0.0
      %2321 = vmatpush1.msra.mxu0 0.0
      %2322 = vmatprep.subr.mxu0 0.0
      %2323 = vmatpush1.msra.mxu0 0.0
      %2324 = vmatprep.mubr.f32.mxu0 0.0
      %2325 = vmatmul.mubr.f32.gmra.mrb[0].mxu0 %v2187
      %v2326 = vpop.f32.mrb[0].mxu0
      %v2327 = vadd.f32 %v1756, %v2326
      %v2328 = vpop.f32.mrb[0].mxu0
      %v2329 = vadd.f32 %v1758, %v2328
      %2330 = vdwg.mxu0
      %2331 = vmatprep.subr.mxu0 %v305
      %2332 = vmatpush1.msra.mxu0 %v304
      %2333 = vmatprep.subr.mxu0 %v321
      %2334 = vmatpush1.msra.mxu0 %v320
      %2335 = vmatprep.subr.mxu0 0.0
      %2336 = vmatpush1.msra.mxu0 0.0
      %2337 = vmatprep.subr.mxu0 0.0
      %2338 = vmatpush1.msra.mxu0 0.0
      %2339 = vmatprep.subr.mxu0 0.0
      %2340 = vmatpush1.msra.mxu0 0.0
      %2341 = vmatprep.subr.mxu0 0.0
      %2342 = vmatpush1.msra.mxu0 0.0
      %2343 = vmatprep.subr.mxu0 0.0
      %2344 = vmatpush1.msra.mxu0 0.0
      %2345 = vmatprep.subr.mxu0 0.0
      %2346 = vmatpush1.msra.mxu0 0.0
      %2347 = vmatprep.subr.mxu0 0.0
      %2348 = vmatpush1.msra.mxu0 0.0
      %2349 = vmatprep.subr.mxu0 0.0
      %2350 = vmatpush1.msra.mxu0 0.0
      %2351 = vmatprep.subr.mxu0 0.0
      %2352 = vmatpush1.msra.mxu0 0.0
      %2353 = vmatprep.subr.mxu0 0.0
      %2354 = vmatpush1.msra.mxu0 0.0
      %2355 = vmatprep.subr.mxu0 0.0
      %2356 = vmatpush1.msra.mxu0 0.0
      %2357 = vmatprep.subr.mxu0 0.0
      %2358 = vmatpush1.msra.mxu0 0.0
      %2359 = vmatprep.subr.mxu0 0.0
      %2360 = vmatpush1.msra.mxu0 0.0
      %2361 = vmatprep.subr.mxu0 0.0
      %2362 = vmatpush1.msra.mxu0 0.0
      %2363 = vmatprep.subr.mxu0 0.0
      %2364 = vmatpush1.msra.mxu0 0.0
      %2365 = vmatprep.subr.mxu0 0.0
      %2366 = vmatpush1.msra.mxu0 0.0
      %2367 = vmatprep.subr.mxu0 0.0
      %2368 = vmatpush1.msra.mxu0 0.0
      %2369 = vmatprep.subr.mxu0 0.0
      %2370 = vmatpush1.msra.mxu0 0.0
      %2371 = vmatprep.subr.mxu0 0.0
      %2372 = vmatpush1.msra.mxu0 0.0
      %2373 = vmatprep.subr.mxu0 0.0
      %2374 = vmatpush1.msra.mxu0 0.0
      %2375 = vmatprep.subr.mxu0 0.0
      %2376 = vmatpush1.msra.mxu0 0.0
      %2377 = vmatprep.subr.mxu0 0.0
      %2378 = vmatpush1.msra.mxu0 0.0
      %2379 = vmatprep.subr.mxu0 0.0
      %2380 = vmatpush1.msra.mxu0 0.0
      %2381 = vmatprep.subr.mxu0 0.0
      %2382 = vmatpush1.msra.mxu0 0.0
      %2383 = vmatprep.subr.mxu0 0.0
      %2384 = vmatpush1.msra.mxu0 0.0
      %2385 = vmatprep.subr.mxu0 0.0
      %2386 = vmatpush1.msra.mxu0 0.0
      %2387 = vmatprep.subr.mxu0 0.0
      %2388 = vmatpush1.msra.mxu0 0.0
      %2389 = vmatprep.subr.mxu0 0.0
      %2390 = vmatpush1.msra.mxu0 0.0
      %2391 = vmatprep.subr.mxu0 0.0
      %2392 = vmatpush1.msra.mxu0 0.0
      %2393 = vmatprep.subr.mxu0 0.0
      %2394 = vmatpush1.msra.mxu0 0.0
      %2395 = vmatprep.mubr.f32.mxu0 0.0
      %2396 = vmatmul.mubr.f32.gmra.mrb[0].mxu0 %v2187
      %v2397 = vpop.f32.mrb[0].mxu0
      %v2398 = vadd.f32 %v1827, %v2397
      %v2399 = vpop.f32.mrb[0].mxu0
      %v2400 = vadd.f32 %v1829, %v2399
      %2401 = vdwg.mxu0
      %2402 = vmatprep.subr.mxu0 %v307
      %2403 = vmatpush1.msra.mxu0 %v306
      %2404 = vmatprep.subr.mxu0 %v323
      %2405 = vmatpush1.msra.mxu0 %v322
      %2406 = vmatprep.subr.mxu0 0.0
      %2407 = vmatpush1.msra.mxu0 0.0
      %2408 = vmatprep.subr.mxu0 0.0
      %2409 = vmatpush1.msra.mxu0 0.0
      %2410 = vmatprep.subr.mxu0 0.0
      %2411 = vmatpush1.msra.mxu0 0.0
      %2412 = vmatprep.subr.mxu0 0.0
      %2413 = vmatpush1.msra.mxu0 0.0
      %2414 = vmatprep.subr.mxu0 0.0
      %2415 = vmatpush1.msra.mxu0 0.0
      %2416 = vmatprep.subr.mxu0 0.0
      %2417 = vmatpush1.msra.mxu0 0.0
      %2418 = vmatprep.subr.mxu0 0.0
      %2419 = vmatpush1.msra.mxu0 0.0
      %2420 = vmatprep.subr.mxu0 0.0
      %2421 = vmatpush1.msra.mxu0 0.0
      %2422 = vmatprep.subr.mxu0 0.0
      %2423 = vmatpush1.msra.mxu0 0.0
      %2424 = vmatprep.subr.mxu0 0.0
      %2425 = vmatpush1.msra.mxu0 0.0
      %2426 = vmatprep.subr.mxu0 0.0
      %2427 = vmatpush1.msra.mxu0 0.0
      %2428 = vmatprep.subr.mxu0 0.0
      %2429 = vmatpush1.msra.mxu0 0.0
      %2430 = vmatprep.subr.mxu0 0.0
      %2431 = vmatpush1.msra.mxu0 0.0
      %2432 = vmatprep.subr.mxu0 0.0
      %2433 = vmatpush1.msra.mxu0 0.0
      %2434 = vmatprep.subr.mxu0 0.0
      %2435 = vmatpush1.msra.mxu0 0.0
      %2436 = vmatprep.subr.mxu0 0.0
      %2437 = vmatpush1.msra.mxu0 0.0
      %2438 = vmatprep.subr.mxu0 0.0
      %2439 = vmatpush1.msra.mxu0 0.0
      %2440 = vmatprep.subr.mxu0 0.0
      %2441 = vmatpush1.msra.mxu0 0.0
      %2442 = vmatprep.subr.mxu0 0.0
      %2443 = vmatpush1.msra.mxu0 0.0
      %2444 = vmatprep.subr.mxu0 0.0
      %2445 = vmatpush1.msra.mxu0 0.0
      %2446 = vmatprep.subr.mxu0 0.0
      %2447 = vmatpush1.msra.mxu0 0.0
      %2448 = vmatprep.subr.mxu0 0.0
      %2449 = vmatpush1.msra.mxu0 0.0
      %2450 = vmatprep.subr.mxu0 0.0
      %2451 = vmatpush1.msra.mxu0 0.0
      %2452 = vmatprep.subr.mxu0 0.0
      %2453 = vmatpush1.msra.mxu0 0.0
      %2454 = vmatprep.subr.mxu0 0.0
      %2455 = vmatpush1.msra.mxu0 0.0
      %2456 = vmatprep.subr.mxu0 0.0
      %2457 = vmatpush1.msra.mxu0 0.0
      %2458 = vmatprep.subr.mxu0 0.0
      %2459 = vmatpush1.msra.mxu0 0.0
      %2460 = vmatprep.subr.mxu0 0.0
      %2461 = vmatpush1.msra.mxu0 0.0
      %2462 = vmatprep.subr.mxu0 0.0
      %2463 = vmatpush1.msra.mxu0 0.0
      %2464 = vmatprep.subr.mxu0 0.0
      %2465 = vmatpush1.msra.mxu0 0.0
      %2466 = vmatprep.mubr.f32.mxu0 0.0
      %2467 = vmatmul.mubr.f32.gmra.mrb[0].mxu0 %v2187
      %v2468 = vpop.f32.mrb[0].mxu0
      %v2469 = vadd.f32 %v1898, %v2468
      %v2470 = vpop.f32.mrb[0].mxu0
      %v2471 = vadd.f32 %v1900, %v2470
      %2472 = vdwg.mxu0
      %2473 = vmatprep.subr.mxu0 %v309
      %2474 = vmatpush1.msra.mxu0 %v308
      %2475 = vmatprep.subr.mxu0 %v325
      %2476 = vmatpush1.msra.mxu0 %v324
      %2477 = vmatprep.subr.mxu0 0.0
      %2478 = vmatpush1.msra.mxu0 0.0
      %2479 = vmatprep.subr.mxu0 0.0
      %2480 = vmatpush1.msra.mxu0 0.0
      %2481 = vmatprep.subr.mxu0 0.0
      %2482 = vmatpush1.msra.mxu0 0.0
      %2483 = vmatprep.subr.mxu0 0.0
      %2484 = vmatpush1.msra.mxu0 0.0
      %2485 = vmatprep.subr.mxu0 0.0
      %2486 = vmatpush1.msra.mxu0 0.0
      %2487 = vmatprep.subr.mxu0 0.0
      %2488 = vmatpush1.msra.mxu0 0.0
      %2489 = vmatprep.subr.mxu0 0.0
      %2490 = vmatpush1.msra.mxu0 0.0
      %2491 = vmatprep.subr.mxu0 0.0
      %2492 = vmatpush1.msra.mxu0 0.0
      %2493 = vmatprep.subr.mxu0 0.0
      %2494 = vmatpush1.msra.mxu0 0.0
      %2495 = vmatprep.subr.mxu0 0.0
      %2496 = vmatpush1.msra.mxu0 0.0
      %2497 = vmatprep.subr.mxu0 0.0
      %2498 = vmatpush1.msra.mxu0 0.0
      %2499 = vmatprep.subr.mxu0 0.0
      %2500 = vmatpush1.msra.mxu0 0.0
      %2501 = vmatprep.subr.mxu0 0.0
      %2502 = vmatpush1.msra.mxu0 0.0
      %2503 = vmatprep.subr.mxu0 0.0
      %2504 = vmatpush1.msra.mxu0 0.0
      %2505 = vmatprep.subr.mxu0 0.0
      %2506 = vmatpush1.msra.mxu0 0.0
      %2507 = vmatprep.subr.mxu0 0.0
      %2508 = vmatpush1.msra.mxu0 0.0
      %2509 = vmatprep.subr.mxu0 0.0
      %2510 = vmatpush1.msra.mxu0 0.0
      %2511 = vmatprep.subr.mxu0 0.0
      %2512 = vmatpush1.msra.mxu0 0.0
      %2513 = vmatprep.subr.mxu0 0.0
      %2514 = vmatpush1.msra.mxu0 0.0
      %2515 = vmatprep.subr.mxu0 0.0
      %2516 = vmatpush1.msra.mxu0 0.0
      %2517 = vmatprep.subr.mxu0 0.0
      %2518 = vmatpush1.msra.mxu0 0.0
      %2519 = vmatprep.subr.mxu0 0.0
      %2520 = vmatpush1.msra.mxu0 0.0
      %2521 = vmatprep.subr.mxu0 0.0
      %2522 = vmatpush1.msra.mxu0 0.0
      %2523 = vmatprep.subr.mxu0 0.0
      %2524 = vmatpush1.msra.mxu0 0.0
      %2525 = vmatprep.subr.mxu0 0.0
      %2526 = vmatpush1.msra.mxu0 0.0
      %2527 = vmatprep.subr.mxu0 0.0
      %2528 = vmatpush1.msra.mxu0 0.0
      %2529 = vmatprep.subr.mxu0 0.0
      %2530 = vmatpush1.msra.mxu0 0.0
      %2531 = vmatprep.subr.mxu0 0.0
      %2532 = vmatpush1.msra.mxu0 0.0
      %2533 = vmatprep.subr.mxu0 0.0
      %2534 = vmatpush1.msra.mxu0 0.0
      %2535 = vmatprep.subr.mxu0 0.0
      %2536 = vmatpush1.msra.mxu0 0.0
      %2537 = vmatprep.mubr.f32.mxu0 0.0
      %2538 = vmatmul.mubr.f32.gmra.mrb[0].mxu0 %v2187
      %v2539 = vpop.f32.mrb[0].mxu0
      %v2540 = vadd.f32 %v1969, %v2539
      %v2541 = vpop.f32.mrb[0].mxu0
      %v2542 = vadd.f32 %v1971, %v2541
      %2543 = vdwg.mxu0
      %2544 = vmatprep.subr.mxu0 %v311
      %2545 = vmatpush1.msra.mxu0 %v310
      %2546 = vmatprep.subr.mxu0 %v327
      %2547 = vmatpush1.msra.mxu0 %v326
      %2548 = vmatprep.subr.mxu0 0.0
      %2549 = vmatpush1.msra.mxu0 0.0
      %2550 = vmatprep.subr.mxu0 0.0
      %2551 = vmatpush1.msra.mxu0 0.0
      %2552 = vmatprep.subr.mxu0 0.0
      %2553 = vmatpush1.msra.mxu0 0.0
      %2554 = vmatprep.subr.mxu0 0.0
      %2555 = vmatpush1.msra.mxu0 0.0
      %2556 = vmatprep.subr.mxu0 0.0
      %2557 = vmatpush1.msra.mxu0 0.0
      %2558 = vmatprep.subr.mxu0 0.0
      %2559 = vmatpush1.msra.mxu0 0.0
      %2560 = vmatprep.subr.mxu0 0.0
      %2561 = vmatpush1.msra.mxu0 0.0
      %2562 = vmatprep.subr.mxu0 0.0
      %2563 = vmatpush1.msra.mxu0 0.0
      %2564 = vmatprep.subr.mxu0 0.0
      %2565 = vmatpush1.msra.mxu0 0.0
      %2566 = vmatprep.subr.mxu0 0.0
      %2567 = vmatpush1.msra.mxu0 0.0
      %2568 = vmatprep.subr.mxu0 0.0
      %2569 = vmatpush1.msra.mxu0 0.0
      %2570 = vmatprep.subr.mxu0 0.0
      %2571 = vmatpush1.msra.mxu0 0.0
      %2572 = vmatprep.subr.mxu0 0.0
      %2573 = vmatpush1.msra.mxu0 0.0
      %2574 = vmatprep.subr.mxu0 0.0
      %2575 = vmatpush1.msra.mxu0 0.0
      %2576 = vmatprep.subr.mxu0 0.0
      %2577 = vmatpush1.msra.mxu0 0.0
      %2578 = vmatprep.subr.mxu0 0.0
      %2579 = vmatpush1.msra.mxu0 0.0
      %2580 = vmatprep.subr.mxu0 0.0
      %2581 = vmatpush1.msra.mxu0 0.0
      %2582 = vmatprep.subr.mxu0 0.0
      %2583 = vmatpush1.msra.mxu0 0.0
      %2584 = vmatprep.subr.mxu0 0.0
      %2585 = vmatpush1.msra.mxu0 0.0
      %2586 = vmatprep.subr.mxu0 0.0
      %2587 = vmatpush1.msra.mxu0 0.0
      %2588 = vmatprep.subr.mxu0 0.0
      %2589 = vmatpush1.msra.mxu0 0.0
      %2590 = vmatprep.subr.mxu0 0.0
      %2591 = vmatpush1.msra.mxu0 0.0
      %2592 = vmatprep.subr.mxu0 0.0
      %2593 = vmatpush1.msra.mxu0 0.0
      %2594 = vmatprep.subr.mxu0 0.0
      %2595 = vmatpush1.msra.mxu0 0.0
      %2596 = vmatprep.subr.mxu0 0.0
      %2597 = vmatpush1.msra.mxu0 0.0
      %2598 = vmatprep.subr.mxu0 0.0
      %2599 = vmatpush1.msra.mxu0 0.0
      %2600 = vmatprep.subr.mxu0 0.0
      %2601 = vmatpush1.msra.mxu0 0.0
      %2602 = vmatprep.subr.mxu0 0.0
      %2603 = vmatpush1.msra.mxu0 0.0
      %2604 = vmatprep.subr.mxu0 0.0
      %2605 = vmatpush1.msra.mxu0 0.0
      %2606 = vmatprep.subr.mxu0 0.0
      %2607 = vmatpush1.msra.mxu0 0.0
      %2608 = vmatprep.mubr.f32.mxu0 0.0
      %2609 = vmatmul.mubr.f32.gmra.mrb[0].mxu0 %v2187
      %v2610 = vpop.f32.mrb[0].mxu0
      %v2611 = vadd.f32 %v2040, %v2610
      %v2612 = vpop.f32.mrb[0].mxu0
      %v2613 = vadd.f32 %v2042, %v2612
      %2614 = vdwg.mxu0
      %2615 = vmatprep.subr.mxu0 %v313
      %2616 = vmatpush1.msra.mxu0 %v312
      %2617 = vmatprep.subr.mxu0 %v329
      %2618 = vmatpush1.msra.mxu0 %v328
      %2619 = vmatprep.subr.mxu0 0.0
      %2620 = vmatpush1.msra.mxu0 0.0
      %2621 = vmatprep.subr.mxu0 0.0
      %2622 = vmatpush1.msra.mxu0 0.0
      %2623 = vmatprep.subr.mxu0 0.0
      %2624 = vmatpush1.msra.mxu0 0.0
      %2625 = vmatprep.subr.mxu0 0.0
      %2626 = vmatpush1.msra.mxu0 0.0
      %2627 = vmatprep.subr.mxu0 0.0
      %2628 = vmatpush1.msra.mxu0 0.0
      %2629 = vmatprep.subr.mxu0 0.0
      %2630 = vmatpush1.msra.mxu0 0.0
      %2631 = vmatprep.subr.mxu0 0.0
      %2632 = vmatpush1.msra.mxu0 0.0
      %2633 = vmatprep.subr.mxu0 0.0
      %2634 = vmatpush1.msra.mxu0 0.0
      %2635 = vmatprep.subr.mxu0 0.0
      %2636 = vmatpush1.msra.mxu0 0.0
      %2637 = vmatprep.subr.mxu0 0.0
      %2638 = vmatpush1.msra.mxu0 0.0
      %2639 = vmatprep.subr.mxu0 0.0
      %2640 = vmatpush1.msra.mxu0 0.0
      %2641 = vmatprep.subr.mxu0 0.0
      %2642 = vmatpush1.msra.mxu0 0.0
      %2643 = vmatprep.subr.mxu0 0.0
      %2644 = vmatpush1.msra.mxu0 0.0
      %2645 = vmatprep.subr.mxu0 0.0
      %2646 = vmatpush1.msra.mxu0 0.0
      %2647 = vmatprep.subr.mxu0 0.0
      %2648 = vmatpush1.msra.mxu0 0.0
      %2649 = vmatprep.subr.mxu0 0.0
      %2650 = vmatpush1.msra.mxu0 0.0
      %2651 = vmatprep.subr.mxu0 0.0
      %2652 = vmatpush1.msra.mxu0 0.0
      %2653 = vmatprep.subr.mxu0 0.0
      %2654 = vmatpush1.msra.mxu0 0.0
      %2655 = vmatprep.subr.mxu0 0.0
      %2656 = vmatpush1.msra.mxu0 0.0
      %2657 = vmatprep.subr.mxu0 0.0
      %2658 = vmatpush1.msra.mxu0 0.0
      %2659 = vmatprep.subr.mxu0 0.0
      %2660 = vmatpush1.msra.mxu0 0.0
      %2661 = vmatprep.subr.mxu0 0.0
      %2662 = vmatpush1.msra.mxu0 0.0
      %2663 = vmatprep.subr.mxu0 0.0
      %2664 = vmatpush1.msra.mxu0 0.0
      %2665 = vmatprep.subr.mxu0 0.0
      %2666 = vmatpush1.msra.mxu0 0.0
      %2667 = vmatprep.subr.mxu0 0.0
      %2668 = vmatpush1.msra.mxu0 0.0
      %2669 = vmatprep.subr.mxu0 0.0
      %2670 = vmatpush1.msra.mxu0 0.0
      %2671 = vmatprep.subr.mxu0 0.0
      %2672 = vmatpush1.msra.mxu0 0.0
      %2673 = vmatprep.subr.mxu0 0.0
      %2674 = vmatpush1.msra.mxu0 0.0
      %2675 = vmatprep.subr.mxu0 0.0
      %2676 = vmatpush1.msra.mxu0 0.0
      %2677 = vmatprep.subr.mxu0 0.0
      %2678 = vmatpush1.msra.mxu0 0.0
      %2679 = vmatprep.mubr.f32.mxu0 0.0
      %2680 = vmatmul.mubr.f32.gmra.mrb[0].mxu0 %v2187
      %v2681 = vpop.f32.mrb[0].mxu0
      %v2682 = vadd.f32 %v2111, %v2681
      %v2683 = vpop.f32.mrb[0].mxu0
      %v2684 = vadd.f32 %v2113, %v2683
      %2685 = vdwg.mxu0
      %2686 = vmatprep.subr.mxu0 %v315
      %2687 = vmatpush1.msra.mxu0 %v314
      %2688 = vmatprep.subr.mxu0 %v331
      %2689 = vmatpush1.msra.mxu0 %v330
      %2690 = vmatprep.subr.mxu0 0.0
      %2691 = vmatpush1.msra.mxu0 0.0
      %2692 = vmatprep.subr.mxu0 0.0
      %2693 = vmatpush1.msra.mxu0 0.0
      %2694 = vmatprep.subr.mxu0 0.0
      %2695 = vmatpush1.msra.mxu0 0.0
      %2696 = vmatprep.subr.mxu0 0.0
      %2697 = vmatpush1.msra.mxu0 0.0
      %2698 = vmatprep.subr.mxu0 0.0
      %2699 = vmatpush1.msra.mxu0 0.0
      %2700 = vmatprep.subr.mxu0 0.0
      %2701 = vmatpush1.msra.mxu0 0.0
      %2702 = vmatprep.subr.mxu0 0.0
      %2703 = vmatpush1.msra.mxu0 0.0
      %2704 = vmatprep.subr.mxu0 0.0
      %2705 = vmatpush1.msra.mxu0 0.0
      %2706 = vmatprep.subr.mxu0 0.0
      %2707 = vmatpush1.msra.mxu0 0.0
      %2708 = vmatprep.subr.mxu0 0.0
      %2709 = vmatpush1.msra.mxu0 0.0
      %2710 = vmatprep.subr.mxu0 0.0
      %2711 = vmatpush1.msra.mxu0 0.0
      %2712 = vmatprep.subr.mxu0 0.0
      %2713 = vmatpush1.msra.mxu0 0.0
      %2714 = vmatprep.subr.mxu0 0.0
      %2715 = vmatpush1.msra.mxu0 0.0
      %2716 = vmatprep.subr.mxu0 0.0
      %2717 = vmatpush1.msra.mxu0 0.0
      %2718 = vmatprep.subr.mxu0 0.0
      %2719 = vmatpush1.msra.mxu0 0.0
      %2720 = vmatprep.subr.mxu0 0.0
      %2721 = vmatpush1.msra.mxu0 0.0
      %2722 = vmatprep.subr.mxu0 0.0
      %2723 = vmatpush1.msra.mxu0 0.0
      %2724 = vmatprep.subr.mxu0 0.0
      %2725 = vmatpush1.msra.mxu0 0.0
      %2726 = vmatprep.subr.mxu0 0.0
      %2727 = vmatpush1.msra.mxu0 0.0
      %2728 = vmatprep.subr.mxu0 0.0
      %2729 = vmatpush1.msra.mxu0 0.0
      %2730 = vmatprep.subr.mxu0 0.0
      %2731 = vmatpush1.msra.mxu0 0.0
      %2732 = vmatprep.subr.mxu0 0.0
      %2733 = vmatpush1.msra.mxu0 0.0
      %2734 = vmatprep.subr.mxu0 0.0
      %2735 = vmatpush1.msra.mxu0 0.0
      %2736 = vmatprep.subr.mxu0 0.0
      %2737 = vmatpush1.msra.mxu0 0.0
      %2738 = vmatprep.subr.mxu0 0.0
      %2739 = vmatpush1.msra.mxu0 0.0
      %2740 = vmatprep.subr.mxu0 0.0
      %2741 = vmatpush1.msra.mxu0 0.0
      %2742 = vmatprep.subr.mxu0 0.0
      %2743 = vmatpush1.msra.mxu0 0.0
      %2744 = vmatprep.subr.mxu0 0.0
      %2745 = vmatpush1.msra.mxu0 0.0
      %2746 = vmatprep.subr.mxu0 0.0
      %2747 = vmatpush1.msra.mxu0 0.0
      %2748 = vmatprep.subr.mxu0 0.0
      %2749 = vmatpush1.msra.mxu0 0.0
      %2750 = vmatprep.mubr.f32.mxu0 0.0
      %2751 = vmatmul.mubr.f32.gmra.mrb[0].mxu0 %v2187
      %v2752 = vpop.f32.mrb[0].mxu0
      %v2753 = vadd.f32 %v2182, %v2752
      %v2754 = vpop.f32.mrb[0].mxu0
      %v2755 = vadd.f32 %v2184, %v2754
      %2756 = vdwg.mxu0
      %s2757 = sld [smem:[#allocation2]]
      %v2758 = vstv %s2757
      %v2759 = vadd.f32 %v2256, %v2758
      %v2760 = vadd.f32 %v2258, %v2758
      %v2761 = vadd.f32 %v2327, %v2758
      %v2762 = vadd.f32 %v2329, %v2758
      %v2763 = vadd.f32 %v2398, %v2758
      %v2764 = vadd.f32 %v2400, %v2758
      %v2765 = vadd.f32 %v2469, %v2758
      %v2766 = vadd.f32 %v2471, %v2758
      %v2767 = vadd.f32 %v2540, %v2758
      %v2768 = vadd.f32 %v2542, %v2758
      %v2769 = vadd.f32 %v2611, %v2758
      %v2770 = vadd.f32 %v2613, %v2758
      %v2771 = vadd.f32 %v2682, %v2758
      %v2772 = vadd.f32 %v2684, %v2758
      %v2773 = vadd.f32 %v2753, %v2758
      %v2774 = vadd.f32 %v2755, %v2758
      %v2775 = vsub.f32 0.0, %v2759
      %v2776 = vsub.f32 0.0, %v2760
      %v2777 = vsub.f32 0.0, %v2761
      %v2778 = vsub.f32 0.0, %v2762
      %v2779 = vsub.f32 0.0, %v2763
      %v2780 = vsub.f32 0.0, %v2764
      %v2781 = vsub.f32 0.0, %v2765
      %v2782 = vsub.f32 0.0, %v2766
      %v2783 = vsub.f32 0.0, %v2767
      %v2784 = vsub.f32 0.0, %v2768
      %v2785 = vsub.f32 0.0, %v2769
      %v2786 = vsub.f32 0.0, %v2770
      %v2787 = vsub.f32 0.0, %v2771
      %v2788 = vsub.f32 0.0, %v2772
      %v2789 = vsub.f32 0.0, %v2773
      %v2790 = vsub.f32 0.0, %v2774
      %v2791 = vmul.f32 %v2775, 1.442695
      %v2792 = vpow.pop %v2791
      %v2793 = vmul.f32 %v2776, 1.442695
      %v2794 = vpow.pop %v2793
      %v2795 = vmul.f32 %v2777, 1.442695
      %v2796 = vpow.pop %v2795
      %v2797 = vmul.f32 %v2778, 1.442695
      %v2798 = vpow.pop %v2797
      %v2799 = vmul.f32 %v2779, 1.442695
      %v2800 = vpow.pop %v2799
      %v2801 = vmul.f32 %v2780, 1.442695
      %v2802 = vpow.pop %v2801
      %v2803 = vmul.f32 %v2781, 1.442695
      %v2804 = vpow.pop %v2803
      %v2805 = vmul.f32 %v2782, 1.442695
      %v2806 = vpow.pop %v2805
      %v2807 = vmul.f32 %v2783, 1.442695
      %v2808 = vpow.pop %v2807
      %v2809 = vmul.f32 %v2784, 1.442695
      %v2810 = vpow.pop %v2809
      %v2811 = vmul.f32 %v2785, 1.442695
      %v2812 = vpow.pop %v2811
      %v2813 = vmul.f32 %v2786, 1.442695
      %v2814 = vpow.pop %v2813
      %v2815 = vmul.f32 %v2787, 1.442695
      %v2816 = vpow.pop %v2815
      %v2817 = vmul.f32 %v2788, 1.442695
      %v2818 = vpow.pop %v2817
      %v2819 = vmul.f32 %v2789, 1.442695
      %v2820 = vpow.pop %v2819
      %v2821 = vmul.f32 %v2790, 1.442695
      %v2822 = vpow.pop %v2821
      %v2823 = vadd.f32 %v2792, 1.0
      %v2824 = vadd.f32 %v2794, 1.0
      %v2825 = vadd.f32 %v2796, 1.0
      %v2826 = vadd.f32 %v2798, 1.0
      %v2827 = vadd.f32 %v2800, 1.0
      %v2828 = vadd.f32 %v2802, 1.0
      %v2829 = vadd.f32 %v2804, 1.0
      %v2830 = vadd.f32 %v2806, 1.0
      %v2831 = vadd.f32 %v2808, 1.0
      %v2832 = vadd.f32 %v2810, 1.0
      %v2833 = vadd.f32 %v2812, 1.0
      %v2834 = vadd.f32 %v2814, 1.0
      %v2835 = vadd.f32 %v2816, 1.0
      %v2836 = vadd.f32 %v2818, 1.0
      %v2837 = vadd.f32 %v2820, 1.0
      %v2838 = vadd.f32 %v2822, 1.0
      %v2839 = vrcp.pop %v2823
      %v2840 = vmul.f32 1.0, %v2839
      %v2841 = vrcp.pop %v2824
      %v2842 = vmul.f32 1.0, %v2841
      %v2843 = vrcp.pop %v2825
      %v2844 = vmul.f32 1.0, %v2843
      %v2845 = vrcp.pop %v2826
      %v2846 = vmul.f32 1.0, %v2845
      %v2847 = vrcp.pop %v2827
      %v2848 = vmul.f32 1.0, %v2847
      %v2849 = vrcp.pop %v2828
      %v2850 = vmul.f32 1.0, %v2849
      %v2851 = vrcp.pop %v2829
      %v2852 = vmul.f32 1.0, %v2851
      %v2853 = vrcp.pop %v2830
      %v2854 = vmul.f32 1.0, %v2853
      %v2855 = vrcp.pop %v2831
      %v2856 = vmul.f32 1.0, %v2855
      %v2857 = vrcp.pop %v2832
      %v2858 = vmul.f32 1.0, %v2857
      %v2859 = vrcp.pop %v2833
      %v2860 = vmul.f32 1.0, %v2859
      %v2861 = vrcp.pop %v2834
      %v2862 = vmul.f32 1.0, %v2861
      %v2863 = vrcp.pop %v2835
      %v2864 = vmul.f32 1.0, %v2863
      %v2865 = vrcp.pop %v2836
      %v2866 = vmul.f32 1.0, %v2865
      %v2867 = vrcp.pop %v2837
      %v2868 = vmul.f32 1.0, %v2867
      %v2869 = vrcp.pop %v2838
      %v2870 = vmul.f32 1.0, %v2869
      %v2871 = vlaneseq
      %v2872 = vshrl.u32 %v2871, 7
      %v2873 = vsub.s32 0, %v2872
      %v2874 = vrot.slane %v2840, %v2873
      %v2875 = vlaneseq
      %v2876 = vshrl.u32 %v2875, 7
      %v2877 = vsub.s32 0, %v2876
      %v2878 = vrot.slane %v2842, %v2877
      %v2879 = vlaneseq
      %v2880 = vshrl.u32 %v2879, 7
      %v2881 = vsub.s32 0, %v2880
      %v2882 = vrot.slane %v2844, %v2881
      %v2883 = vlaneseq
      %v2884 = vshrl.u32 %v2883, 7
      %v2885 = vsub.s32 0, %v2884
      %v2886 = vrot.slane %v2846, %v2885
      %v2887 = vlaneseq
      %v2888 = vshrl.u32 %v2887, 7
      %v2889 = vsub.s32 0, %v2888
      %v2890 = vrot.slane %v2848, %v2889
      %v2891 = vlaneseq
      %v2892 = vshrl.u32 %v2891, 7
      %v2893 = vsub.s32 0, %v2892
      %v2894 = vrot.slane %v2850, %v2893
      %v2895 = vlaneseq
      %v2896 = vshrl.u32 %v2895, 7
      %v2897 = vsub.s32 0, %v2896
      %v2898 = vrot.slane %v2852, %v2897
      %v2899 = vlaneseq
      %v2900 = vshrl.u32 %v2899, 7
      %v2901 = vsub.s32 0, %v2900
      %v2902 = vrot.slane %v2854, %v2901
      %v2903 = vlaneseq
      %v2904 = vshrl.u32 %v2903, 7
      %v2905 = vsub.s32 0, %v2904
      %v2906 = vrot.slane %v2856, %v2905
      %v2907 = vlaneseq
      %v2908 = vshrl.u32 %v2907, 7
      %v2909 = vsub.s32 0, %v2908
      %v2910 = vrot.slane %v2858, %v2909
      %v2911 = vlaneseq
      %v2912 = vshrl.u32 %v2911, 7
      %v2913 = vsub.s32 0, %v2912
      %v2914 = vrot.slane %v2860, %v2913
      %v2915 = vlaneseq
      %v2916 = vshrl.u32 %v2915, 7
      %v2917 = vsub.s32 0, %v2916
      %v2918 = vrot.slane %v2862, %v2917
      %v2919 = vlaneseq
      %v2920 = vshrl.u32 %v2919, 7
      %v2921 = vsub.s32 0, %v2920
      %v2922 = vrot.slane %v2864, %v2921
      %v2923 = vlaneseq
      %v2924 = vshrl.u32 %v2923, 7
      %v2925 = vsub.s32 0, %v2924
      %v2926 = vrot.slane %v2866, %v2925
      %v2927 = vlaneseq
      %v2928 = vshrl.u32 %v2927, 7
      %v2929 = vsub.s32 0, %v2928
      %v2930 = vrot.slane %v2868, %v2929
      %v2931 = vlaneseq
      %v2932 = vshrl.u32 %v2931, 7
      %v2933 = vsub.s32 0, %v2932
      %v2934 = vrot.slane %v2870, %v2933
      %v2935 = vmul.f32 %v1064, %v2874
      %v2936 = vmul.f32 %v1066, %v2878
      %v2937 = vmul.f32 %v1141, %v2882
      %v2938 = vmul.f32 %v1143, %v2886
      %v2939 = vmul.f32 %v1218, %v2890
      %v2940 = vmul.f32 %v1220, %v2894
      %v2941 = vmul.f32 %v1295, %v2898
      %v2942 = vmul.f32 %v1297, %v2902
      %v2943 = vmul.f32 %v1372, %v2906
      %v2944 = vmul.f32 %v1374, %v2910
      %v2945 = vmul.f32 %v1449, %v2914
      %v2946 = vmul.f32 %v1451, %v2918
      %v2947 = vmul.f32 %v1526, %v2922
      %v2948 = vmul.f32 %v1528, %v2926
      %v2949 = vmul.f32 %v1603, %v2930
      %v2950 = vmul.f32 %v1605, %v2934
      %v2951 = vmul.f32 %v1070, %v2874
      %v2952 = vmul.f32 %v1072, %v2878
      %v2953 = vmul.f32 %v1147, %v2882
      %v2954 = vmul.f32 %v1149, %v2886
      %v2955 = vmul.f32 %v1224, %v2890
      %v2956 = vmul.f32 %v1226, %v2894
      %v2957 = vmul.f32 %v1301, %v2898
      %v2958 = vmul.f32 %v1303, %v2902
      %v2959 = vmul.f32 %v1378, %v2906
      %v2960 = vmul.f32 %v1380, %v2910
      %v2961 = vmul.f32 %v1455, %v2914
      %v2962 = vmul.f32 %v1457, %v2918
      %v2963 = vmul.f32 %v1532, %v2922
      %v2964 = vmul.f32 %v1534, %v2926
      %v2965 = vmul.f32 %v1609, %v2930
      %v2966 = vmul.f32 %v1611, %v2934
      %2967 = vst [vmem:[%s299] sm:$0xff] %v2935
      %2968 = vst [vmem:[%s299 + $0x8] sm:$0xff] %v2936
      %2969 = vst [vmem:[%s299 + $0x10] sm:$0xff] %v2937
      %2970 = vst [vmem:[%s299 + $0x18] sm:$0xff] %v2938
      %2971 = vst [vmem:[%s299 + $0x20] sm:$0xff] %v2939
      %2972 = vst [vmem:[%s299 + $0x28] sm:$0xff] %v2940
      %2973 = vst [vmem:[%s299 + $0x30] sm:$0xff] %v2941
      %2974 = vst [vmem:[%s299 + $0x38] sm:$0xff] %v2942
      %2975 = vst [vmem:[%s299 + $0x40] sm:$0xff] %v2943
      %2976 = vst [vmem:[%s299 + $0x48] sm:$0xff] %v2944
      %2977 = vst [vmem:[%s299 + $0x50] sm:$0xff] %v2945
      %2978 = vst [vmem:[%s299 + $0x58] sm:$0xff] %v2946
      %2979 = vst [vmem:[%s299 + $0x60] sm:$0xff] %v2947
      %2980 = vst [vmem:[%s299 + $0x68] sm:$0xff] %v2948
      %2981 = vst [vmem:[%s299 + $0x70] sm:$0xff] %v2949
      %2982 = vst [vmem:[%s299 + $0x78] sm:$0xff] %v2950
      %2983 = vst [vmem:[%s299 + $0x80] sm:$0xff] %v2951
      %2984 = vst [vmem:[%s299 + $0x88] sm:$0xff] %v2952
      %2985 = vst [vmem:[%s299 + $0x90] sm:$0xff] %v2953
      %2986 = vst [vmem:[%s299 + $0x98] sm:$0xff] %v2954
      %2987 = vst [vmem:[%s299 + $0xa0] sm:$0xff] %v2955
      %2988 = vst [vmem:[%s299 + $0xa8] sm:$0xff] %v2956
      %2989 = vst [vmem:[%s299 + $0xb0] sm:$0xff] %v2957
      %2990 = vst [vmem:[%s299 + $0xb8] sm:$0xff] %v2958
      %2991 = vst [vmem:[%s299 + $0xc0] sm:$0xff] %v2959
      %2992 = vst [vmem:[%s299 + $0xc8] sm:$0xff] %v2960
      %2993 = vst [vmem:[%s299 + $0xd0] sm:$0xff] %v2961
      %2994 = vst [vmem:[%s299 + $0xd8] sm:$0xff] %v2962
      %2995 = vst [vmem:[%s299 + $0xe0] sm:$0xff] %v2963
      %2996 = vst [vmem:[%s299 + $0xe8] sm:$0xff] %v2964
      %2997 = vst [vmem:[%s299 + $0xf0] sm:$0xff] %v2965
      %2998 = vst [vmem:[%s299 + $0xf8] sm:$0xff] %v2966
      %p2999 = scmp.lt.s32.totalorder %s19, 1
      %s3000 = scalar_select %p2999, %s19, 1
      %s3001 = smul.addr %s3000, 32
      %s3002 = smul.addr %s3001, 8
      %s3003 = scalar_lea.vmem %s7, %s3002
      // Predicated region
      $region49: #{dfi_forward.1} parent=47 // pred_check
        %p3004 = pneg %p194
      $region50: #{dfi_forward.1} parent=47 // pred_check_branch
        %3006 = sbr.rel (%p3004) target = $region52
      $region51: #{dfi_forward.1} parent=47 // pred_region
        _
      $region52: #{dfi_forward.1} parent=47 // pred_fallthru
        _
    $region48: #{dfi_forward.1} parent=5 // pred_fallthru
      _
    %p3007 = scmp.le.s32.totalorder 2, %s14
    // Predicated region
    $region53: #{dfi_forward.1} parent=5 // pred_check
      %p3008 = pneg %p3007
    $region54: #{dfi_forward.1} parent=5 // pred_check_branch
      %3010 = sbr.rel (%p3008) target = $region56
    $region55: #{dfi_forward.1} parent=5 // pred_region
      %s3011 = ssub.s32 %s14, 2
      // Predicated region
      $region57: #{dfi_forward.1} parent=55 // pred_check
        %p3012 = pneg %p200
      $region58: #{dfi_forward.1} parent=55 // pred_check_branch
        %3014 = sbr.rel (%p3012) target = $region60
      $region59: #{dfi_forward.1} parent=55 // pred_region
        %p3015 = scmp.lt.s32.totalorder %s20, 1
        %s3016 = scalar_select %p3015, %s20, 1
        %s3017 = smul.addr %s3016, 32
        %s3018 = smul.addr %s3017, 8
        %s3019 = scalar_lea.vmem %s7, %s3018
      $region60: #{dfi_forward.1} parent=55 // pred_fallthru
        _
    $region56: #{dfi_forward.1} parent=5 // pred_fallthru
      _
  $region6: #{dfi_forward.1} parent=0 // loop_footer
    %s18 = sadd.s32 1, %s14
  $region7: #{dfi_forward.1} parent=0 // loop_footer_branch
    %13 = sbr.rel target = $region3
  $region8: #{dfi_forward.1} parent=0 // loop_exit
    _

</llo_original>
